<compile_context>
chip_gen: v7x
topology: tpu7x:2x2x1
jax: 0.10.0
libtpu: 0.0.40
codegen_flags: <defaults>
</compile_context>

<pallas_src>
import jax
import jax.numpy as jnp
from jax.experimental import pallas as pl
from jax.experimental.pallas import tpu as pltpu


# --------------------------------------------------------------------------- #
# Kernel
# --------------------------------------------------------------------------- #
def _make_kernel(H, W, stride, identity_shortcut):
    """Build the per-image BottleneckIR kernel (H, W, stride, shortcut are static)."""
    HW = H * W

    def kernel(*refs):
        out_ref = refs[-1]
        (x_ref, w1_ref, w2_ref, w3_ref,
         b1_ref, a1_ref, b2_ref, a2_ref, b3_ref) = refs[:9]
        rest = refs[9:-1]
        ws_ref = bs_ref = sel_ref = None
        k = 0
        if not identity_shortcut:
            ws_ref, bs_ref = rest[k], rest[k + 1]
            k += 2
        if stride > 1:
            sel_ref = rest[k]

        x = x_ref[...]                                   # (Cin, HW) f32
        xb = x.astype(jnp.bfloat16)

        # ---- residual: 1x1 conv (BN0 & BN1 folded into w1/b1) + PReLU ----
        h = jnp.dot(w1_ref[...], xb, preferred_element_type=jnp.float32)
        h = h + b1_ref[...]
        h = jnp.where(h > 0, h, a1_ref[...] * h)         # (Cr, HW) f32

        # ---- 3x3 conv (pad 1, BN2 folded): 9 lane-rolled, border-masked taps ----
        lane = jax.lax.broadcasted_iota(jnp.int32, (1, HW), 1)
        if W & (W - 1) == 0:                             # power-of-two fast path
            xpos = lane & (W - 1)
            ypos = lane >> (W.bit_length() - 1)
        else:
            xpos = lane % W
            ypos = lane // W
        row_ok = {-1: ypos >= 1, 0: None, 1: ypos <= H - 2}
        col_ok = {-1: xpos >= 1, 0: None, 1: xpos <= W - 2}

        acc = jnp.zeros_like(h)
        for kh in range(3):
            for kw in range(3):
                dh, dw = kh - 1, kw - 1
                shift = dh * W + dw                      # tap reads h[p + shift]
                t = h if shift == 0 else pltpu.roll(h, (-shift) % HW, axis=1)
                m = row_ok[dh]
                if col_ok[dw] is not None:
                    m = col_ok[dw] if m is None else (m & col_ok[dw])
                if m is not None:
                    t = jnp.where(m, t, 0.0)             # zero the conv border
                acc = acc + jnp.dot(w2_ref[kh, kw], t.astype(jnp.bfloat16),
                                    preferred_element_type=jnp.float32)

        h2 = acc + b2_ref[...]
        h2 = jnp.where(h2 > 0, h2, a2_ref[...] * h2)
        h2b = h2.astype(jnp.bfloat16)

        # ---- stride (exact 0/1 lane-selection matmul) + final 1x1 conv (BN3 folded) ----
        if stride > 1:
            h2b = jnp.dot(h2b, sel_ref[...],
                          preferred_element_type=jnp.float32).astype(jnp.bfloat16)
        res = jnp.dot(w3_ref[...], h2b, preferred_element_type=jnp.float32)
        res = res + b3_ref[...]

        # ---- shortcut ----
        if identity_shortcut:
            # MaxPool2d(1, stride): exact (f32) strided subsample of x.
            if stride > 1:
                sc = jnp.dot(x, sel_ref[...].astype(jnp.float32),
                             preferred_element_type=jnp.float32)
            else:
                sc = x
        else:
            xsb = xb
            if stride > 1:
                xsb = jnp.dot(xb, sel_ref[...],
                              preferred_element_type=jnp.float32).astype(jnp.bfloat16)
            sc = jnp.dot(ws_ref[...], xsb, preferred_element_type=jnp.float32)
            sc = sc + bs_ref[...]

        out_ref[...] = (res + sc).astype(out_ref.dtype)

    return kernel


# --------------------------------------------------------------------------- #
# Host-side parameter folding / helpers
# --------------------------------------------------------------------------- #
def fold_params(p):
    """Fold every BatchNorm (scale, shift) into the adjacent conv weight/bias."""
    fp = {
        "w1f": p["s0"][:, None] * p["w1"] * p["s1"][None, :],    # (Cin, Cr)
        "b1f": (p["b0"] @ p["w1"]) * p["s1"] + p["b1"],          # (Cr,)
        "a1": p["a1"],
        "w2f": p["w2"] * p["s2"][None, None, None, :],           # (3, 3, Cr, Cr)
        "b2f": p["b2"],
        "a2": p["a2"],
        "w3f": p["w3"] * p["s3"][None, :],                       # (Cr, Cd)
        "b3f": p["b3"],
    }
    if "ws" in p:                                                # projection shortcut
        fp["wsf"] = p["ws"] * p["ss"][None, :]                   # (Cin, Cd)
        fp["bsf"] = p["bs"]
    return fp


def _stride_select_matrix(H, W, stride):
    """(H*W, Ho*Wo) 0/1 matrix selecting the strided spatial positions."""
    Ho = (H - 1) // stride + 1
    Wo = (W - 1) // stride + 1
    q = jnp.arange(Ho * Wo)
    src = (q // Wo) * stride * W + (q % Wo) * stride
    return jnp.zeros((H * W, Ho * Wo), jnp.float32).at[src, q].set(1.0)


def _full_spec(a):
    nd = a.ndim
    return pl.BlockSpec(a.shape, lambda b, nd=nd: (0,) * nd)


def bottleneck_ir_forward(x_nchw, params, stride):
    """PyTorch-equivalent BottleneckIR forward: NCHW in, NCHW out."""
    B, Cin, H, W = x_nchw.shape
    Cd = params["w3"].shape[1]
    identity_shortcut = "ws" not in params
    Ho = (H - 1) // stride + 1
    Wo = (W - 1) // stride + 1

    fp = fold_params(params)
    bf = lambda a: jnp.asarray(a, jnp.bfloat16)
    col = lambda a: jnp.asarray(a, jnp.float32).reshape(-1, 1)

    x = jnp.asarray(x_nchw, jnp.float32).reshape(B, Cin, H * W)
    args = [x,
            bf(fp["w1f"].T),                                 # (Cr, Cin)
            bf(jnp.transpose(fp["w2f"], (0, 1, 3, 2))),      # (3, 3, Cr_out, Cr_in)
            bf(fp["w3f"].T),                                 # (Cd, Cr)
            col(fp["b1f"]), col(fp["a1"]),
            col(fp["b2f"]), col(fp["a2"]),
            col(fp["b3f"])]
    if not identity_shortcut:
        args += [bf(fp["wsf"].T), col(fp["bsf"])]            # (Cd, Cin), (Cd, 1)
    if stride > 1:
        args += [bf(_stride_select_matrix(H, W, stride))]    # (HW, Ho*Wo)

    in_specs = [pl.BlockSpec((None, Cin, H * W), lambda b: (b, 0, 0))]
    in_specs += [_full_spec(a) for a in args[1:]]
    out_specs = pl.BlockSpec((None, Cd, Ho * Wo), lambda b: (b, 0, 0))

    out = pl.pallas_call(
        _make_kernel(H, W, stride, identity_shortcut),
        out_shape=jax.ShapeDtypeStruct((B, Cd, Ho * Wo), jnp.float32),
        grid_spec=pltpu.PrefetchScalarGridSpec(
            num_scalar_prefetch=0,
            grid=(B,),
            in_specs=in_specs,
            out_specs=out_specs),
        compiler_params=pltpu.CompilerParams(
            dimension_semantics=("parallel",)),
    )(*args)
    return out.reshape(B, Cd, Ho, Wo)


# --------------------------------------------------------------------------- #
# Synthetic parameters + references
# --------------------------------------------------------------------------- #
def init_params(key, in_channel, depth):
    """Deterministic synthetic parameters matching the module's __init__ shapes."""
    red = depth // 4
    eps = 1e-5
    keys = jax.random.split(key, 11)

    def bn(k, c):  # fold BatchNorm2d running stats (inference) -> scale/shift
        k1, k2, k3, k4 = jax.random.split(k, 4)
        gamma = 1.0 + 0.1 * jax.random.normal(k1, (c,), jnp.float32)
        beta = 0.1 * jax.random.normal(k2, (c,), jnp.float32)
        mean = 0.1 * jax.random.normal(k3, (c,), jnp.float32)
        var = 0.5 + 0.5 * jax.random.uniform(k4, (c,), jnp.float32)
        scale = gamma / jnp.sqrt(var + eps)
        shift = beta - mean * scale
        return scale, shift

    p = {}
    p["s0"], p["b0"] = bn(keys[0], in_channel)
    p["w1"] = 0.1 * jax.random.normal(keys[1], (in_channel, red), jnp.float32)
    p["s1"], p["b1"] = bn(keys[2], red)
    p["a1"] = 0.25 + 0.05 * jax.random.normal(keys[3], (red,), jnp.float32)
    p["w2"] = 0.1 * jax.random.normal(keys[4], (3, 3, red, red), jnp.float32)
    p["s2"], p["b2"] = bn(keys[5], red)
    p["a2"] = 0.25 + 0.05 * jax.random.normal(keys[6], (red,), jnp.float32)
    p["w3"] = 0.1 * jax.random.normal(keys[7], (red, depth), jnp.float32)
    p["s3"], p["b3"] = bn(keys[8], depth)
    if in_channel != depth:
        p["ws"] = 0.1 * jax.random.normal(keys[9], (in_channel, depth), jnp.float32)
        p["ss"], p["bs"] = bn(keys[10], depth)
    return p


def reference_forward(x_nchw, p, stride):
    """Pure-f32 JAX reference (lax conv) replicating the PyTorch forward."""
    x = jnp.transpose(x_nchw, (0, 2, 3, 1)).astype(jnp.float32)
    dn = ("NHWC", "HWIO", "NHWC")

    def conv(h, w, s, pad):
        return jax.lax.conv_general_dilated(h, w, (s, s), pad, dimension_numbers=dn)

    if "ws" in p:
        sc = conv(x, p["ws"][None, None], stride, "VALID") * p["ss"] + p["bs"]
    else:
        sc = x[:, ::stride, ::stride, :]                 # MaxPool2d(1, stride)
    h = x * p["s0"] + p["b0"]
    h = conv(h, p["w1"][None, None], 1, "VALID") * p["s1"] + p["b1"]
    h = jnp.where(h > 0, h, p["a1"] * h)
    h = conv(h, p["w2"], 1, ((1, 1), (1, 1))) * p["s2"] + p["b2"]
    h = jnp.where(h > 0, h, p["a2"] * h)
    h = conv(h, p["w3"][None, None], stride, "VALID") * p["s3"] + p["b3"]
    return jnp.transpose(h + sc, (0, 3, 1, 2))


def folded_bf16_reference(x_nchw, fp, stride):
    """Precision-matched reference: same folded weights, bf16 operands, f32 accum."""
    x = jnp.transpose(x_nchw, (0, 2, 3, 1)).astype(jnp.float32)
    dn = ("NHWC", "HWIO", "NHWC")
    bfc = lambda a: a.astype(jnp.bfloat16)

    def conv(h, w, s, pad):
        return jax.lax.conv_general_dilated(
            bfc(h), bfc(w), (s, s), pad, dimension_numbers=dn,
            preferred_element_type=jnp.float32)

    if "wsf" in fp:
        sc = conv(x, fp["wsf"][None, None], stride, "VALID") + fp["bsf"]
    else:
        sc = x[:, ::stride, ::stride, :]
    h = conv(x, fp["w1f"][None, None], 1, "VALID") + fp["b1f"]
    h = jnp.where(h > 0, h, fp["a1"] * h)
    h = conv(h, fp["w2f"], 1, ((1, 1), (1, 1))) + fp["b2f"]
    h = jnp.where(h > 0, h, fp["a2"] * h)
    h = conv(h, fp["w3f"][None, None], stride, "VALID") + fp["b3f"]
    return jnp.transpose(h + sc, (0, 3, 1, 2))


def _check(name, out, ref, atol, rtol):
    err = float(jnp.max(jnp.abs(out - ref)))
    assert jnp.allclose(out, ref, atol=atol, rtol=rtol), (
        f"{name}: kernel/reference mismatch, max_err={err}")


if __name__ == "__main__":
    key = jax.random.PRNGKey(0)
    kx1, kp1, kx2, kp2 = jax.random.split(key, 4)

    # --- config 1: projection shortcut (in_channel != depth), stride 2 ---
    B, Cin, H, W, depth, stride = 2, 8, 16, 16, 16, 2
    x1 = jax.random.normal(kx1, (B, Cin, H, W), jnp.float32)     # NCHW like PyTorch
    p1 = init_params(kp1, Cin, depth)
    out1 = jax.block_until_ready(bottleneck_ir_forward(x1, p1, stride))
    assert out1.shape == (B, depth, H // stride, W // stride), out1.shape
    # tight: same bf16-rounded folded weights (isolates the Pallas machinery)
    _check("cfg1/bf16-matched", out1,
           folded_bf16_reference(x1, fold_params(p1), stride), atol=1e-4, rtol=1e-4)
    # loose: straight f32 module replication (bf16 matmul operands explain the tol)
    _check("cfg1/f32-module", out1, reference_forward(x1, p1, stride),
           atol=3e-2, rtol=3e-2)

    # --- config 2: identity shortcut (in_channel == depth), stride 1 ---
    x2 = jax.random.normal(kx2, (B, depth, H, W), jnp.float32)
    p2 = init_params(kp2, depth, depth)
    out2 = jax.block_until_ready(bottleneck_ir_forward(x2, p2, 1))
    assert out2.shape == (B, depth, H, W), out2.shape
    _check("cfg2/bf16-matched", out2,
           folded_bf16_reference(x2, fold_params(p2), 1), atol=1e-4, rtol=1e-4)
    _check("cfg2/f32-module", out2, reference_forward(x2, p2, 1),
           atol=3e-2, rtol=3e-2)

    print("KERNEL_OK")
</pallas_src>

<mosaic_0001>
module attributes {stable_mosaic.version = 11 : i64} {
  func.func @kernel(%arg0: i32, %arg1: memref<1x8x256xf32, #tpu.memory_space<vmem>>, %arg2: memref<4x8xbf16, #tpu.memory_space<vmem>>, %arg3: memref<3x3x4x4xbf16, #tpu.memory_space<vmem>>, %arg4: memref<16x4xbf16, #tpu.memory_space<vmem>>, %arg5: memref<4x1xf32, #tpu.memory_space<vmem>>, %arg6: memref<4x1xf32, #tpu.memory_space<vmem>>, %arg7: memref<4x1xf32, #tpu.memory_space<vmem>>, %arg8: memref<4x1xf32, #tpu.memory_space<vmem>>, %arg9: memref<16x1xf32, #tpu.memory_space<vmem>>, %arg10: memref<16x8xbf16, #tpu.memory_space<vmem>>, %arg11: memref<16x1xf32, #tpu.memory_space<vmem>>, %arg12: memref<256x64xbf16, #tpu.memory_space<vmem>>, %arg13: memref<1x16x64xf32, #tpu.memory_space<vmem>>) attributes {dimension_semantics = [#tpu.dimension_semantics<parallel>], iteration_bounds = array<i64: 2>, scalar_prefetch = 0 : i64, scratch_operands = 0 : i64, tpu.core_type = #tpu.core_type<tc>, window_params = [{transform_indices = @transform_0, window_bounds = array<i64: 1, 8, 256>}, {pipeline_mode = #tpu.pipeline_mode<synchronous>, transform_indices = @transform_1, window_bounds = array<i64: 4, 8>}, {pipeline_mode = #tpu.pipeline_mode<synchronous>, transform_indices = @transform_2, window_bounds = array<i64: 3, 3, 4, 4>}, {pipeline_mode = #tpu.pipeline_mode<synchronous>, transform_indices = @transform_3, window_bounds = array<i64: 16, 4>}, {pipeline_mode = #tpu.pipeline_mode<synchronous>, transform_indices = @transform_4, window_bounds = array<i64: 4, 1>}, {pipeline_mode = #tpu.pipeline_mode<synchronous>, transform_indices = @transform_5, window_bounds = array<i64: 4, 1>}, {pipeline_mode = #tpu.pipeline_mode<synchronous>, transform_indices = @transform_6, window_bounds = array<i64: 4, 1>}, {pipeline_mode = #tpu.pipeline_mode<synchronous>, transform_indices = @transform_7, window_bounds = array<i64: 4, 1>}, {pipeline_mode = #tpu.pipeline_mode<synchronous>, transform_indices = @transform_8, window_bounds = array<i64: 16, 1>}, {pipeline_mode = #tpu.pipeline_mode<synchronous>, transform_indices = @transform_9, window_bounds = array<i64: 16, 8>}, {pipeline_mode = #tpu.pipeline_mode<synchronous>, transform_indices = @transform_10, window_bounds = array<i64: 16, 1>}, {pipeline_mode = #tpu.pipeline_mode<synchronous>, transform_indices = @transform_11, window_bounds = array<i64: 256, 64>}, {transform_indices = @transform_12, window_bounds = array<i64: 1, 16, 64>}]} {
    %c0 = arith.constant 0 : index
    %c0_0 = arith.constant 0 : index
    %c0_1 = arith.constant 0 : index
    %0 = vector.load %arg1[%c0, %c0_0, %c0_1] : memref<1x8x256xf32, #tpu.memory_space<vmem>>, vector<1x8x256xf32>
    %1 = vector.shape_cast %0 : vector<1x8x256xf32> to vector<8x256xf32>
    %2 = arith.truncf %1 : vector<8x256xf32> to vector<8x256xbf16>
    %c0_2 = arith.constant 0 : index
    %c0_3 = arith.constant 0 : index
    %3 = vector.load %arg2[%c0_2, %c0_3] : memref<4x8xbf16, #tpu.memory_space<vmem>>, vector<4x8xbf16>
    %cst = arith.constant dense<0.000000e+00> : vector<4x256xf32>
    %4 = tpu.matmul %3, %2, %cst {dimension_numbers = #tpu.dot_dimension_numbers<[1], [0], [0], [1], [0, 0, 1, 1], [], []>} : vector<4x8xbf16>, vector<8x256xbf16>, vector<4x256xf32> -> vector<4x256xf32>
    %c0_4 = arith.constant 0 : index
    %c0_5 = arith.constant 0 : index
    %5 = vector.load %arg5[%c0_4, %c0_5] : memref<4x1xf32, #tpu.memory_space<vmem>>, vector<4x1xf32>
    %6 = vector.broadcast %5 : vector<4x1xf32> to vector<4x256xf32>
    %7 = arith.addf %4, %6 : vector<4x256xf32>
    %cst_6 = arith.constant 0.000000e+00 : f32
    %8 = vector.broadcast %cst_6 : f32 to vector<4x256xf32>
    %9 = arith.cmpf ogt, %7, %8 : vector<4x256xf32>
    %c0_7 = arith.constant 0 : index
    %c0_8 = arith.constant 0 : index
    %10 = vector.load %arg6[%c0_7, %c0_8] : memref<4x1xf32, #tpu.memory_space<vmem>>, vector<4x1xf32>
    %11 = vector.broadcast %10 : vector<4x1xf32> to vector<4x256xf32>
    %12 = arith.mulf %11, %7 : vector<4x256xf32>
    %13 = arith.select %9, %7, %12 : vector<4x256xi1>, vector<4x256xf32>
    %14 = tpu.iota {dimensions = array<i32: 1>} : vector<1x256xi32>
    %c15_i32 = arith.constant 15 : i32
    %15 = vector.broadcast %c15_i32 : i32 to vector<1x256xi32>
    %16 = arith.andi %14, %15 : vector<1x256xi32>
    %c4_i32 = arith.constant 4 : i32
    %17 = vector.broadcast %c4_i32 : i32 to vector<1x256xi32>
    %18 = arith.shrsi %14, %17 : vector<1x256xi32>
    %c1_i32 = arith.constant 1 : i32
    %19 = vector.broadcast %c1_i32 : i32 to vector<1x256xi32>
    %20 = arith.cmpi sge, %18, %19 : vector<1x256xi32>
    %c14_i32 = arith.constant 14 : i32
    %21 = vector.broadcast %c14_i32 : i32 to vector<1x256xi32>
    %22 = arith.cmpi sle, %18, %21 : vector<1x256xi32>
    %c1_i32_9 = arith.constant 1 : i32
    %23 = vector.broadcast %c1_i32_9 : i32 to vector<1x256xi32>
    %24 = arith.cmpi sge, %16, %23 : vector<1x256xi32>
    %c14_i32_10 = arith.constant 14 : i32
    %25 = vector.broadcast %c14_i32_10 : i32 to vector<1x256xi32>
    %26 = arith.cmpi sle, %16, %25 : vector<1x256xi32>
    %cst_11 = arith.constant 0.000000e+00 : f32
    %27 = vector.broadcast %cst_11 : f32 to vector<4x256xf32>
    %c17_i32 = arith.constant 17 : i32
    %28 = tpu.dynamic_rotate %13 by %c17_i32 dim 1 : vector<4x256xf32>, i32 -> vector<4x256xf32>
    %29 = arith.andi %20, %24 : vector<1x256xi1>
    %cst_12 = arith.constant 0.000000e+00 : f32
    %30 = vector.shape_cast %29 : vector<1x256xi1> to vector<1x256xi1>
    %31 = vector.broadcast %30 : vector<1x256xi1> to vector<4x256xi1>
    %32 = vector.broadcast %cst_12 : f32 to vector<4x256xf32>
    %33 = arith.select %31, %28, %32 : vector<4x256xi1>, vector<4x256xf32>
    %c0_13 = arith.constant 0 : index
    %c0_14 = arith.constant 0 : index
    %c0_15 = arith.constant 0 : index
    %c0_16 = arith.constant 0 : index
    %34 = vector.load %arg3[%c0_13, %c0_14, %c0_15, %c0_16] : memref<3x3x4x4xbf16, #tpu.memory_space<vmem>>, vector<1x1x4x4xbf16>
    %35 = vector.shape_cast %34 : vector<1x1x4x4xbf16> to vector<4x4xbf16>
    %36 = arith.truncf %33 : vector<4x256xf32> to vector<4x256xbf16>
    %cst_17 = arith.constant dense<0.000000e+00> : vector<4x256xf32>
    %37 = tpu.matmul %35, %36, %cst_17 {dimension_numbers = #tpu.dot_dimension_numbers<[1], [0], [0], [1], [0, 0, 1, 1], [], []>} : vector<4x4xbf16>, vector<4x256xbf16>, vector<4x256xf32> -> vector<4x256xf32>
    %38 = arith.addf %27, %37 : vector<4x256xf32>
    %c16_i32 = arith.constant 16 : i32
    %39 = tpu.dynamic_rotate %13 by %c16_i32 dim 1 : vector<4x256xf32>, i32 -> vector<4x256xf32>
    %cst_18 = arith.constant 0.000000e+00 : f32
    %40 = vector.shape_cast %20 : vector<1x256xi1> to vector<1x256xi1>
    %41 = vector.broadcast %40 : vector<1x256xi1> to vector<4x256xi1>
    %42 = vector.broadcast %cst_18 : f32 to vector<4x256xf32>
    %43 = arith.select %41, %39, %42 : vector<4x256xi1>, vector<4x256xf32>
    %c0_19 = arith.constant 0 : index
    %c1 = arith.constant 1 : index
    %c0_20 = arith.constant 0 : index
    %c0_21 = arith.constant 0 : index
    %44 = vector.load %arg3[%c0_19, %c1, %c0_20, %c0_21] : memref<3x3x4x4xbf16, #tpu.memory_space<vmem>>, vector<1x1x4x4xbf16>
    %45 = vector.shape_cast %44 : vector<1x1x4x4xbf16> to vector<4x4xbf16>
    %46 = arith.truncf %43 : vector<4x256xf32> to vector<4x256xbf16>
    %cst_22 = arith.constant dense<0.000000e+00> : vector<4x256xf32>
    %47 = tpu.matmul %45, %46, %cst_22 {dimension_numbers = #tpu.dot_dimension_numbers<[1], [0], [0], [1], [0, 0, 1, 1], [], []>} : vector<4x4xbf16>, vector<4x256xbf16>, vector<4x256xf32> -> vector<4x256xf32>
    %48 = arith.addf %38, %47 : vector<4x256xf32>
    %c15_i32_23 = arith.constant 15 : i32
    %49 = tpu.dynamic_rotate %13 by %c15_i32_23 dim 1 : vector<4x256xf32>, i32 -> vector<4x256xf32>
    %50 = arith.andi %20, %26 : vector<1x256xi1>
    %cst_24 = arith.constant 0.000000e+00 : f32
    %51 = vector.shape_cast %50 : vector<1x256xi1> to vector<1x256xi1>
    %52 = vector.broadcast %51 : vector<1x256xi1> to vector<4x256xi1>
    %53 = vector.broadcast %cst_24 : f32 to vector<4x256xf32>
    %54 = arith.select %52, %49, %53 : vector<4x256xi1>, vector<4x256xf32>
    %c0_25 = arith.constant 0 : index
    %c2 = arith.constant 2 : index
    %c0_26 = arith.constant 0 : index
    %c0_27 = arith.constant 0 : index
    %55 = vector.load %arg3[%c0_25, %c2, %c0_26, %c0_27] : memref<3x3x4x4xbf16, #tpu.memory_space<vmem>>, vector<1x1x4x4xbf16>
    %56 = vector.shape_cast %55 : vector<1x1x4x4xbf16> to vector<4x4xbf16>
    %57 = arith.truncf %54 : vector<4x256xf32> to vector<4x256xbf16>
    %cst_28 = arith.constant dense<0.000000e+00> : vector<4x256xf32>
    %58 = tpu.matmul %56, %57, %cst_28 {dimension_numbers = #tpu.dot_dimension_numbers<[1], [0], [0], [1], [0, 0, 1, 1], [], []>} : vector<4x4xbf16>, vector<4x256xbf16>, vector<4x256xf32> -> vector<4x256xf32>
    %59 = arith.addf %48, %58 : vector<4x256xf32>
    %c1_i32_29 = arith.constant 1 : i32
    %60 = tpu.dynamic_rotate %13 by %c1_i32_29 dim 1 : vector<4x256xf32>, i32 -> vector<4x256xf32>
    %cst_30 = arith.constant 0.000000e+00 : f32
    %61 = vector.shape_cast %24 : vector<1x256xi1> to vector<1x256xi1>
    %62 = vector.broadcast %61 : vector<1x256xi1> to vector<4x256xi1>
    %63 = vector.broadcast %cst_30 : f32 to vector<4x256xf32>
    %64 = arith.select %62, %60, %63 : vector<4x256xi1>, vector<4x256xf32>
    %c1_31 = arith.constant 1 : index
    %c0_32 = arith.constant 0 : index
    %c0_33 = arith.constant 0 : index
    %c0_34 = arith.constant 0 : index
    %65 = vector.load %arg3[%c1_31, %c0_32, %c0_33, %c0_34] : memref<3x3x4x4xbf16, #tpu.memory_space<vmem>>, vector<1x1x4x4xbf16>
    %66 = vector.shape_cast %65 : vector<1x1x4x4xbf16> to vector<4x4xbf16>
    %67 = arith.truncf %64 : vector<4x256xf32> to vector<4x256xbf16>
    %cst_35 = arith.constant dense<0.000000e+00> : vector<4x256xf32>
    %68 = tpu.matmul %66, %67, %cst_35 {dimension_numbers = #tpu.dot_dimension_numbers<[1], [0], [0], [1], [0, 0, 1, 1], [], []>} : vector<4x4xbf16>, vector<4x256xbf16>, vector<4x256xf32> -> vector<4x256xf32>
    %69 = arith.addf %59, %68 : vector<4x256xf32>
    %c1_36 = arith.constant 1 : index
    %c1_37 = arith.constant 1 : index
    %c0_38 = arith.constant 0 : index
    %c0_39 = arith.constant 0 : index
    %70 = vector.load %arg3[%c1_36, %c1_37, %c0_38, %c0_39] : memref<3x3x4x4xbf16, #tpu.memory_space<vmem>>, vector<1x1x4x4xbf16>
    %71 = vector.shape_cast %70 : vector<1x1x4x4xbf16> to vector<4x4xbf16>
    %72 = arith.truncf %13 : vector<4x256xf32> to vector<4x256xbf16>
    %cst_40 = arith.constant dense<0.000000e+00> : vector<4x256xf32>
    %73 = tpu.matmul %71, %72, %cst_40 {dimension_numbers = #tpu.dot_dimension_numbers<[1], [0], [0], [1], [0, 0, 1, 1], [], []>} : vector<4x4xbf16>, vector<4x256xbf16>, vector<4x256xf32> -> vector<4x256xf32>
    %74 = arith.addf %69, %73 : vector<4x256xf32>
    %c255_i32 = arith.constant 255 : i32
    %75 = tpu.dynamic_rotate %13 by %c255_i32 dim 1 : vector<4x256xf32>, i32 -> vector<4x256xf32>
    %cst_41 = arith.constant 0.000000e+00 : f32
    %76 = vector.shape_cast %26 : vector<1x256xi1> to vector<1x256xi1>
    %77 = vector.broadcast %76 : vector<1x256xi1> to vector<4x256xi1>
    %78 = vector.broadcast %cst_41 : f32 to vector<4x256xf32>
    %79 = arith.select %77, %75, %78 : vector<4x256xi1>, vector<4x256xf32>
    %c1_42 = arith.constant 1 : index
    %c2_43 = arith.constant 2 : index
    %c0_44 = arith.constant 0 : index
    %c0_45 = arith.constant 0 : index
    %80 = vector.load %arg3[%c1_42, %c2_43, %c0_44, %c0_45] : memref<3x3x4x4xbf16, #tpu.memory_space<vmem>>, vector<1x1x4x4xbf16>
    %81 = vector.shape_cast %80 : vector<1x1x4x4xbf16> to vector<4x4xbf16>
    %82 = arith.truncf %79 : vector<4x256xf32> to vector<4x256xbf16>
    %cst_46 = arith.constant dense<0.000000e+00> : vector<4x256xf32>
    %83 = tpu.matmul %81, %82, %cst_46 {dimension_numbers = #tpu.dot_dimension_numbers<[1], [0], [0], [1], [0, 0, 1, 1], [], []>} : vector<4x4xbf16>, vector<4x256xbf16>, vector<4x256xf32> -> vector<4x256xf32>
    %84 = arith.addf %74, %83 : vector<4x256xf32>
    %c241_i32 = arith.constant 241 : i32
    %85 = tpu.dynamic_rotate %13 by %c241_i32 dim 1 : vector<4x256xf32>, i32 -> vector<4x256xf32>
    %86 = arith.andi %22, %24 : vector<1x256xi1>
    %cst_47 = arith.constant 0.000000e+00 : f32
    %87 = vector.shape_cast %86 : vector<1x256xi1> to vector<1x256xi1>
    %88 = vector.broadcast %87 : vector<1x256xi1> to vector<4x256xi1>
    %89 = vector.broadcast %cst_47 : f32 to vector<4x256xf32>
    %90 = arith.select %88, %85, %89 : vector<4x256xi1>, vector<4x256xf32>
    %c2_48 = arith.constant 2 : index
    %c0_49 = arith.constant 0 : index
    %c0_50 = arith.constant 0 : index
    %c0_51 = arith.constant 0 : index
    %91 = vector.load %arg3[%c2_48, %c0_49, %c0_50, %c0_51] : memref<3x3x4x4xbf16, #tpu.memory_space<vmem>>, vector<1x1x4x4xbf16>
    %92 = vector.shape_cast %91 : vector<1x1x4x4xbf16> to vector<4x4xbf16>
    %93 = arith.truncf %90 : vector<4x256xf32> to vector<4x256xbf16>
    %cst_52 = arith.constant dense<0.000000e+00> : vector<4x256xf32>
    %94 = tpu.matmul %92, %93, %cst_52 {dimension_numbers = #tpu.dot_dimension_numbers<[1], [0], [0], [1], [0, 0, 1, 1], [], []>} : vector<4x4xbf16>, vector<4x256xbf16>, vector<4x256xf32> -> vector<4x256xf32>
    %95 = arith.addf %84, %94 : vector<4x256xf32>
    %c240_i32 = arith.constant 240 : i32
    %96 = tpu.dynamic_rotate %13 by %c240_i32 dim 1 : vector<4x256xf32>, i32 -> vector<4x256xf32>
    %cst_53 = arith.constant 0.000000e+00 : f32
    %97 = vector.shape_cast %22 : vector<1x256xi1> to vector<1x256xi1>
    %98 = vector.broadcast %97 : vector<1x256xi1> to vector<4x256xi1>
    %99 = vector.broadcast %cst_53 : f32 to vector<4x256xf32>
    %100 = arith.select %98, %96, %99 : vector<4x256xi1>, vector<4x256xf32>
    %c2_54 = arith.constant 2 : index
    %c1_55 = arith.constant 1 : index
    %c0_56 = arith.constant 0 : index
    %c0_57 = arith.constant 0 : index
    %101 = vector.load %arg3[%c2_54, %c1_55, %c0_56, %c0_57] : memref<3x3x4x4xbf16, #tpu.memory_space<vmem>>, vector<1x1x4x4xbf16>
    %102 = vector.shape_cast %101 : vector<1x1x4x4xbf16> to vector<4x4xbf16>
    %103 = arith.truncf %100 : vector<4x256xf32> to vector<4x256xbf16>
    %cst_58 = arith.constant dense<0.000000e+00> : vector<4x256xf32>
    %104 = tpu.matmul %102, %103, %cst_58 {dimension_numbers = #tpu.dot_dimension_numbers<[1], [0], [0], [1], [0, 0, 1, 1], [], []>} : vector<4x4xbf16>, vector<4x256xbf16>, vector<4x256xf32> -> vector<4x256xf32>
    %105 = arith.addf %95, %104 : vector<4x256xf32>
    %c239_i32 = arith.constant 239 : i32
    %106 = tpu.dynamic_rotate %13 by %c239_i32 dim 1 : vector<4x256xf32>, i32 -> vector<4x256xf32>
    %107 = arith.andi %22, %26 : vector<1x256xi1>
    %cst_59 = arith.constant 0.000000e+00 : f32
    %108 = vector.shape_cast %107 : vector<1x256xi1> to vector<1x256xi1>
    %109 = vector.broadcast %108 : vector<1x256xi1> to vector<4x256xi1>
    %110 = vector.broadcast %cst_59 : f32 to vector<4x256xf32>
    %111 = arith.select %109, %106, %110 : vector<4x256xi1>, vector<4x256xf32>
    %c2_60 = arith.constant 2 : index
    %c2_61 = arith.constant 2 : index
    %c0_62 = arith.constant 0 : index
    %c0_63 = arith.constant 0 : index
    %112 = vector.load %arg3[%c2_60, %c2_61, %c0_62, %c0_63] : memref<3x3x4x4xbf16, #tpu.memory_space<vmem>>, vector<1x1x4x4xbf16>
    %113 = vector.shape_cast %112 : vector<1x1x4x4xbf16> to vector<4x4xbf16>
    %114 = arith.truncf %111 : vector<4x256xf32> to vector<4x256xbf16>
    %cst_64 = arith.constant dense<0.000000e+00> : vector<4x256xf32>
    %115 = tpu.matmul %113, %114, %cst_64 {dimension_numbers = #tpu.dot_dimension_numbers<[1], [0], [0], [1], [0, 0, 1, 1], [], []>} : vector<4x4xbf16>, vector<4x256xbf16>, vector<4x256xf32> -> vector<4x256xf32>
    %116 = arith.addf %105, %115 : vector<4x256xf32>
    %c0_65 = arith.constant 0 : index
    %c0_66 = arith.constant 0 : index
    %117 = vector.load %arg7[%c0_65, %c0_66] : memref<4x1xf32, #tpu.memory_space<vmem>>, vector<4x1xf32>
    %118 = vector.broadcast %117 : vector<4x1xf32> to vector<4x256xf32>
    %119 = arith.addf %116, %118 : vector<4x256xf32>
    %cst_67 = arith.constant 0.000000e+00 : f32
    %120 = vector.broadcast %cst_67 : f32 to vector<4x256xf32>
    %121 = arith.cmpf ogt, %119, %120 : vector<4x256xf32>
    %c0_68 = arith.constant 0 : index
    %c0_69 = arith.constant 0 : index
    %122 = vector.load %arg8[%c0_68, %c0_69] : memref<4x1xf32, #tpu.memory_space<vmem>>, vector<4x1xf32>
    %123 = vector.broadcast %122 : vector<4x1xf32> to vector<4x256xf32>
    %124 = arith.mulf %123, %119 : vector<4x256xf32>
    %125 = arith.select %121, %119, %124 : vector<4x256xi1>, vector<4x256xf32>
    %126 = arith.truncf %125 : vector<4x256xf32> to vector<4x256xbf16>
    %c0_70 = arith.constant 0 : index
    %c0_71 = arith.constant 0 : index
    %127 = vector.load %arg12[%c0_70, %c0_71] : memref<256x64xbf16, #tpu.memory_space<vmem>>, vector<256x64xbf16>
    %cst_72 = arith.constant dense<0.000000e+00> : vector<4x64xf32>
    %128 = tpu.matmul %126, %127, %cst_72 {dimension_numbers = #tpu.dot_dimension_numbers<[1], [0], [0], [1], [0, 0, 1, 1], [], []>} : vector<4x256xbf16>, vector<256x64xbf16>, vector<4x64xf32> -> vector<4x64xf32>
    %129 = arith.truncf %128 : vector<4x64xf32> to vector<4x64xbf16>
    %c0_73 = arith.constant 0 : index
    %c0_74 = arith.constant 0 : index
    %130 = vector.load %arg4[%c0_73, %c0_74] : memref<16x4xbf16, #tpu.memory_space<vmem>>, vector<16x4xbf16>
    %cst_75 = arith.constant dense<0.000000e+00> : vector<16x64xf32>
    %131 = tpu.matmul %130, %129, %cst_75 {dimension_numbers = #tpu.dot_dimension_numbers<[1], [0], [0], [1], [0, 0, 1, 1], [], []>} : vector<16x4xbf16>, vector<4x64xbf16>, vector<16x64xf32> -> vector<16x64xf32>
    %c0_76 = arith.constant 0 : index
    %c0_77 = arith.constant 0 : index
    %132 = vector.load %arg9[%c0_76, %c0_77] : memref<16x1xf32, #tpu.memory_space<vmem>>, vector<16x1xf32>
    %133 = vector.broadcast %132 : vector<16x1xf32> to vector<16x64xf32>
    %134 = arith.addf %131, %133 : vector<16x64xf32>
    %c0_78 = arith.constant 0 : index
    %c0_79 = arith.constant 0 : index
    %135 = vector.load %arg12[%c0_78, %c0_79] : memref<256x64xbf16, #tpu.memory_space<vmem>>, vector<256x64xbf16>
    %cst_80 = arith.constant dense<0.000000e+00> : vector<8x64xf32>
    %136 = tpu.matmul %2, %135, %cst_80 {dimension_numbers = #tpu.dot_dimension_numbers<[1], [0], [0], [1], [0, 0, 1, 1], [], []>} : vector<8x256xbf16>, vector<256x64xbf16>, vector<8x64xf32> -> vector<8x64xf32>
    %137 = arith.truncf %136 : vector<8x64xf32> to vector<8x64xbf16>
    %c0_81 = arith.constant 0 : index
    %c0_82 = arith.constant 0 : index
    %138 = vector.load %arg10[%c0_81, %c0_82] : memref<16x8xbf16, #tpu.memory_space<vmem>>, vector<16x8xbf16>
    %cst_83 = arith.constant dense<0.000000e+00> : vector<16x64xf32>
    %139 = tpu.matmul %138, %137, %cst_83 {dimension_numbers = #tpu.dot_dimension_numbers<[1], [0], [0], [1], [0, 0, 1, 1], [], []>} : vector<16x8xbf16>, vector<8x64xbf16>, vector<16x64xf32> -> vector<16x64xf32>
    %c0_84 = arith.constant 0 : index
    %c0_85 = arith.constant 0 : index
    %140 = vector.load %arg11[%c0_84, %c0_85] : memref<16x1xf32, #tpu.memory_space<vmem>>, vector<16x1xf32>
    %141 = vector.broadcast %140 : vector<16x1xf32> to vector<16x64xf32>
    %142 = arith.addf %139, %141 : vector<16x64xf32>
    %143 = arith.addf %134, %142 : vector<16x64xf32>
    %c0_86 = arith.constant 0 : index
    %c0_87 = arith.constant 0 : index
    %c0_88 = arith.constant 0 : index
    %144 = vector.load %arg13[%c0_86, %c0_87, %c0_88] : memref<1x16x64xf32, #tpu.memory_space<vmem>>, vector<1x16x64xf32>
    %145 = vector.shape_cast %144 : vector<1x16x64xf32> to vector<16x64xf32>
    %146 = vector.shape_cast %143 : vector<16x64xf32> to vector<1x16x64xf32>
    tpu.vector_store %arg13[%c0_86, %c0_87, %c0_88], %146 {strides = array<i32>} : memref<1x16x64xf32, #tpu.memory_space<vmem>>, vector<1x16x64xf32>,
    return
  }
  func.func @transform_0(%arg0: i32) -> (i32, i32, i32) {
    %c0_i32 = arith.constant 0 : i32
    %c0_i32_0 = arith.constant 0 : i32
    %c0_i32_1 = arith.constant 0 : i32
    return %arg0, %c0_i32, %c0_i32_0 : i32, i32, i32
  }
  func.func @transform_1(%arg0: i32) -> (i32, i32) {
    %c0_i32 = arith.constant 0 : i32
    %c0_i32_0 = arith.constant 0 : i32
    %c0_i32_1 = arith.constant 0 : i32
    return %c0_i32, %c0_i32_0 : i32, i32
  }
  func.func @transform_2(%arg0: i32) -> (i32, i32, i32, i32) {
    %c0_i32 = arith.constant 0 : i32
    %c0_i32_0 = arith.constant 0 : i32
    %c0_i32_1 = arith.constant 0 : i32
    %c0_i32_2 = arith.constant 0 : i32
    %c0_i32_3 = arith.constant 0 : i32
    return %c0_i32, %c0_i32_0, %c0_i32_1, %c0_i32_2 : i32, i32, i32, i32
  }
  func.func @transform_3(%arg0: i32) -> (i32, i32) {
    %c0_i32 = arith.constant 0 : i32
    %c0_i32_0 = arith.constant 0 : i32
    %c0_i32_1 = arith.constant 0 : i32
    return %c0_i32, %c0_i32_0 : i32, i32
  }
  func.func @transform_4(%arg0: i32) -> (i32, i32) {
    %c0_i32 = arith.constant 0 : i32
    %c0_i32_0 = arith.constant 0 : i32
    %c0_i32_1 = arith.constant 0 : i32
    return %c0_i32, %c0_i32_0 : i32, i32
  }
  func.func @transform_5(%arg0: i32) -> (i32, i32) {
    %c0_i32 = arith.constant 0 : i32
    %c0_i32_0 = arith.constant 0 : i32
    %c0_i32_1 = arith.constant 0 : i32
    return %c0_i32, %c0_i32_0 : i32, i32
  }
  func.func @transform_6(%arg0: i32) -> (i32, i32) {
    %c0_i32 = arith.constant 0 : i32
    %c0_i32_0 = arith.constant 0 : i32
    %c0_i32_1 = arith.constant 0 : i32
    return %c0_i32, %c0_i32_0 : i32, i32
  }
  func.func @transform_7(%arg0: i32) -> (i32, i32) {
    %c0_i32 = arith.constant 0 : i32
    %c0_i32_0 = arith.constant 0 : i32
    %c0_i32_1 = arith.constant 0 : i32
    return %c0_i32, %c0_i32_0 : i32, i32
  }
  func.func @transform_8(%arg0: i32) -> (i32, i32) {
    %c0_i32 = arith.constant 0 : i32
    %c0_i32_0 = arith.constant 0 : i32
    %c0_i32_1 = arith.constant 0 : i32
    return %c0_i32, %c0_i32_0 : i32, i32
  }
  func.func @transform_9(%arg0: i32) -> (i32, i32) {
    %c0_i32 = arith.constant 0 : i32
    %c0_i32_0 = arith.constant 0 : i32
    %c0_i32_1 = arith.constant 0 : i32
    return %c0_i32, %c0_i32_0 : i32, i32
  }
  func.func @transform_10(%arg0: i32) -> (i32, i32) {
    %c0_i32 = arith.constant 0 : i32
    %c0_i32_0 = arith.constant 0 : i32
    %c0_i32_1 = arith.constant 0 : i32
    return %c0_i32, %c0_i32_0 : i32, i32
  }
  func.func @transform_11(%arg0: i32) -> (i32, i32) {
    %c0_i32 = arith.constant 0 : i32
    %c0_i32_0 = arith.constant 0 : i32
    %c0_i32_1 = arith.constant 0 : i32
    return %c0_i32, %c0_i32_0 : i32, i32
  }
  func.func @transform_12(%arg0: i32) -> (i32, i32, i32) {
    %c0_i32 = arith.constant 0 : i32
    %c0_i32_0 = arith.constant 0 : i32
    %c0_i32_1 = arith.constant 0 : i32
    return %arg0, %c0_i32, %c0_i32_0 : i32, i32, i32
  }
}

</mosaic_0001>

<llo_original>
// kernel: tpu_custom_call.1
$region0: #{tpu_custom_call.1}
  #allocation0 [shape = 'u32[]', space=smem, size = 0x4, offset = 0x4, fixed_abs, tag = 'smem constant byte address 0x4 - core index']
  #allocation1 [shape = 'u32[144,128]{1,0:T(1,128)}', space=vmem, size = 0x12000, scoped, tag = 'internal scratch']
  %s0 = inlined_call_operand.vmem [shape: f32[2,8,256], index: 0, kind: input, shape index: {}]
  %s1 = inlined_call_operand.vmem [shape: bf16[4,8], index: 1, kind: input, shape index: {}]
  %s2 = inlined_call_operand.vmem [shape: bf16[3,3,4,4], index: 2, kind: input, shape index: {}]
  %s3 = inlined_call_operand.vmem [shape: bf16[16,4], index: 3, kind: input, shape index: {}]
  %s4 = inlined_call_operand.vmem [shape: f32[4,1], index: 4, kind: input, shape index: {}]
  %s5 = inlined_call_operand.vmem [shape: f32[4,1], index: 5, kind: input, shape index: {}]
  %s6 = inlined_call_operand.vmem [shape: f32[4,1], index: 6, kind: input, shape index: {}]
  %s7 = inlined_call_operand.vmem [shape: f32[4,1], index: 7, kind: input, shape index: {}]
  %s8 = inlined_call_operand.vmem [shape: f32[16,1], index: 8, kind: input, shape index: {}]
  %s9 = inlined_call_operand.vmem [shape: bf16[16,8], index: 9, kind: input, shape index: {}]
  %s10 = inlined_call_operand.vmem [shape: f32[16,1], index: 10, kind: input, shape index: {}]
  %s11 = inlined_call_operand.vmem [shape: bf16[256,64], index: 11, kind: input, shape index: {}]
  %s12 = inlined_call_operand.hbm [shape: f32[2,16,64], index: 12, kind: output, shape index: {}]
  %s13 = sld [smem:[#allocation0]]
  $region81: #{tpu_custom_call.1} parent=0
    _
  %s15 = ssub.s32 1, %s13
  %s16 = scalar_select 0, %s15, %s13
  $region1: #{tpu_custom_call.1} parent=0
    #allocation2 [shape = 'u8[16384]{0}', space=vmem, size = 0x4000, scoped, tag = 'output window, operand 0']
    #allocation3 [shape = 's32[2]{0}', space=sflag, size = 0x8, scoped, tag = 'scoped memory for tpu_custom_call.1']
    %17 = vsyncpa [#allocation3], 0
    %s18 = scalar_lea.sflag [#allocation3], 1
    %19 = vsyncpa %s18, 0
    loop: start=0, step=1, limit=4
    $region2: #{tpu_custom_call.1} parent=1 // loop_pre_header
      _
    $region3: #{tpu_custom_call.1} parent=1 // loop_header
      %s21 = sphi 0, %s25
      %p22 = scmp.ge.s32.totalorder %s21, 4
      %s31 = sphi 0, %s33
      %s34 = sphi 0, %s31
      %s35 = sphi 0, %s34
      %s51 = sphi 0, %s35
      %s55 = sphi 0, %s55
      %s57 = sphi 0, %s55
      %s58 = sphi 0, %s57
      %s72 = sphi 0, %s58
      %s76 = sphi 0, %s76
      %s78 = sphi 0, %s76
      %s79 = sphi 0, %s78
      %s93 = sphi 0, %s79
      %s97 = sphi 0, %s97
      %s99 = sphi 0, %s97
      %s100 = sphi 0, %s99
      %s114 = sphi 0, %s100
      %s118 = sphi 0, %s118
      %s120 = sphi 0, %s118
      %s121 = sphi 0, %s120
      %s135 = sphi 0, %s121
      %s139 = sphi 0, %s139
      %s141 = sphi 0, %s139
      %s142 = sphi 0, %s141
      %s156 = sphi 0, %s142
      %s160 = sphi 0, %s160
      %s162 = sphi 0, %s160
      %s163 = sphi 0, %s162
      %s177 = sphi 0, %s163
      %s181 = sphi 0, %s181
      %s183 = sphi 0, %s181
      %s184 = sphi 0, %s183
      %s198 = sphi 0, %s184
      %s202 = sphi 0, %s202
      %s204 = sphi 0, %s202
      %s205 = sphi 0, %s204
      %s219 = sphi 0, %s205
      %s223 = sphi 0, %s223
      %s225 = sphi 0, %s223
      %s226 = sphi 0, %s225
      %s240 = sphi 0, %s226
      %s244 = sphi 0, %s244
      %s246 = sphi 0, %s244
      %s247 = sphi 0, %s246
      %s261 = sphi 0, %s247
      %s265 = sphi 0, %s265
      %s267 = sphi 0, %s265
      %s268 = sphi 0, %s267
      %s282 = sphi 0, %s268
      %s288 = sphi 0, %s290
      %s291 = sphi 0, %s288
      %s292 = sphi 0, %s291
      %s308 = sphi 0, %s292
    $region4: #{tpu_custom_call.1} parent=1 // loop_header_branch
      %24 = sbr.rel (%p22) target = $region8
    $region5: #{tpu_custom_call.1} parent=1 // loop_body
      %s26 = ssub.s32 %s21, 1
      %s27 = ssub.s32 %s21, 2
      %s28 = sadd.s32 %s21, 1
      %s29 = ssub.s32 %s21, %s28
      %p30 = scmp.eq.s32.totalorder %s29, 0
      %s32 = sadd.s32 %s31, 1
      %s33 = scalar_select %p30, %s31, %s32
      %p36 = pneg %p30
      %p37 = scmp.eq.s32.totalorder %s21, 1
      %p38 = por %p36, %p37
      %p39 = scmp.ne.s32.totalorder %s31, %s34
      %p40 = scmp.eq.s32.totalorder %s21, 0
      %p41 = por %p39, %p40
      %p42 = scmp.ne.s32.totalorder %s31, %s34
      %p43 = scmp.eq.s32.totalorder %s26, 1
      %p44 = por %p42, %p43
      %p45 = scmp.ne.s32.totalorder %s34, %s35
      %p46 = scmp.eq.s32.totalorder %s26, 0
      %p47 = por %p45, %p46
      %p48 = scmp.ne.s32.totalorder %s34, %s35
      %p49 = scmp.eq.s32.totalorder %s27, 1
      %p50 = por %p48, %p49
      %p52 = scmp.ne.s32.totalorder %s35, %s51
      %p53 = scmp.eq.s32.totalorder %s27, 0
      %p54 = por %p52, %p53
      %s56 = sadd.s32 %s55, 1
      %p59 = scmp.eq.s32.totalorder %s21, 1
      %p60 = scmp.ne.s32.totalorder %s55, %s57
      %p61 = scmp.eq.s32.totalorder %s21, 0
      %p62 = por %p60, %p61
      %p63 = scmp.ne.s32.totalorder %s55, %s57
      %p64 = scmp.eq.s32.totalorder %s26, 1
      %p65 = por %p63, %p64
      %p66 = scmp.ne.s32.totalorder %s57, %s58
      %p67 = scmp.eq.s32.totalorder %s26, 0
      %p68 = por %p66, %p67
      %p69 = scmp.ne.s32.totalorder %s57, %s58
      %p70 = scmp.eq.s32.totalorder %s27, 1
      %p71 = por %p69, %p70
      %p73 = scmp.ne.s32.totalorder %s58, %s72
      %p74 = scmp.eq.s32.totalorder %s27, 0
      %p75 = por %p73, %p74
      %s77 = sadd.s32 %s76, 1
      %p80 = scmp.eq.s32.totalorder %s21, 1
      %p81 = scmp.ne.s32.totalorder %s76, %s78
      %p82 = scmp.eq.s32.totalorder %s21, 0
      %p83 = por %p81, %p82
      %p84 = scmp.ne.s32.totalorder %s76, %s78
      %p85 = scmp.eq.s32.totalorder %s26, 1
      %p86 = por %p84, %p85
      %p87 = scmp.ne.s32.totalorder %s78, %s79
      %p88 = scmp.eq.s32.totalorder %s26, 0
      %p89 = por %p87, %p88
      %p90 = scmp.ne.s32.totalorder %s78, %s79
      %p91 = scmp.eq.s32.totalorder %s27, 1
      %p92 = por %p90, %p91
      %p94 = scmp.ne.s32.totalorder %s79, %s93
      %p95 = scmp.eq.s32.totalorder %s27, 0
      %p96 = por %p94, %p95
      %s98 = sadd.s32 %s97, 1
      %p101 = scmp.eq.s32.totalorder %s21, 1
      %p102 = scmp.ne.s32.totalorder %s97, %s99
      %p103 = scmp.eq.s32.totalorder %s21, 0
      %p104 = por %p102, %p103
      %p105 = scmp.ne.s32.totalorder %s97, %s99
      %p106 = scmp.eq.s32.totalorder %s26, 1
      %p107 = por %p105, %p106
      %p108 = scmp.ne.s32.totalorder %s99, %s100
      %p109 = scmp.eq.s32.totalorder %s26, 0
      %p110 = por %p108, %p109
      %p111 = scmp.ne.s32.totalorder %s99, %s100
      %p112 = scmp.eq.s32.totalorder %s27, 1
      %p113 = por %p111, %p112
      %p115 = scmp.ne.s32.totalorder %s100, %s114
      %p116 = scmp.eq.s32.totalorder %s27, 0
      %p117 = por %p115, %p116
      %s119 = sadd.s32 %s118, 1
      %p122 = scmp.eq.s32.totalorder %s21, 1
      %p123 = scmp.ne.s32.totalorder %s118, %s120
      %p124 = scmp.eq.s32.totalorder %s21, 0
      %p125 = por %p123, %p124
      %p126 = scmp.ne.s32.totalorder %s118, %s120
      %p127 = scmp.eq.s32.totalorder %s26, 1
      %p128 = por %p126, %p127
      %p129 = scmp.ne.s32.totalorder %s120, %s121
      %p130 = scmp.eq.s32.totalorder %s26, 0
      %p131 = por %p129, %p130
      %p132 = scmp.ne.s32.totalorder %s120, %s121
      %p133 = scmp.eq.s32.totalorder %s27, 1
      %p134 = por %p132, %p133
      %p136 = scmp.ne.s32.totalorder %s121, %s135
      %p137 = scmp.eq.s32.totalorder %s27, 0
      %p138 = por %p136, %p137
      %s140 = sadd.s32 %s139, 1
      %p143 = scmp.eq.s32.totalorder %s21, 1
      %p144 = scmp.ne.s32.totalorder %s139, %s141
      %p145 = scmp.eq.s32.totalorder %s21, 0
      %p146 = por %p144, %p145
      %p147 = scmp.ne.s32.totalorder %s139, %s141
      %p148 = scmp.eq.s32.totalorder %s26, 1
      %p149 = por %p147, %p148
      %p150 = scmp.ne.s32.totalorder %s141, %s142
      %p151 = scmp.eq.s32.totalorder %s26, 0
      %p152 = por %p150, %p151
      %p153 = scmp.ne.s32.totalorder %s141, %s142
      %p154 = scmp.eq.s32.totalorder %s27, 1
      %p155 = por %p153, %p154
      %p157 = scmp.ne.s32.totalorder %s142, %s156
      %p158 = scmp.eq.s32.totalorder %s27, 0
      %p159 = por %p157, %p158
      %s161 = sadd.s32 %s160, 1
      %p164 = scmp.eq.s32.totalorder %s21, 1
      %p165 = scmp.ne.s32.totalorder %s160, %s162
      %p166 = scmp.eq.s32.totalorder %s21, 0
      %p167 = por %p165, %p166
      %p168 = scmp.ne.s32.totalorder %s160, %s162
      %p169 = scmp.eq.s32.totalorder %s26, 1
      %p170 = por %p168, %p169
      %p171 = scmp.ne.s32.totalorder %s162, %s163
      %p172 = scmp.eq.s32.totalorder %s26, 0
      %p173 = por %p171, %p172
      %p174 = scmp.ne.s32.totalorder %s162, %s163
      %p175 = scmp.eq.s32.totalorder %s27, 1
      %p176 = por %p174, %p175
      %p178 = scmp.ne.s32.totalorder %s163, %s177
      %p179 = scmp.eq.s32.totalorder %s27, 0
      %p180 = por %p178, %p179
      %s182 = sadd.s32 %s181, 1
      %p185 = scmp.eq.s32.totalorder %s21, 1
      %p186 = scmp.ne.s32.totalorder %s181, %s183
      %p187 = scmp.eq.s32.totalorder %s21, 0
      %p188 = por %p186, %p187
      %p189 = scmp.ne.s32.totalorder %s181, %s183
      %p190 = scmp.eq.s32.totalorder %s26, 1
      %p191 = por %p189, %p190
      %p192 = scmp.ne.s32.totalorder %s183, %s184
      %p193 = scmp.eq.s32.totalorder %s26, 0
      %p194 = por %p192, %p193
      %p195 = scmp.ne.s32.totalorder %s183, %s184
      %p196 = scmp.eq.s32.totalorder %s27, 1
      %p197 = por %p195, %p196
      %p199 = scmp.ne.s32.totalorder %s184, %s198
      %p200 = scmp.eq.s32.totalorder %s27, 0
      %p201 = por %p199, %p200
      %s203 = sadd.s32 %s202, 1
      %p206 = scmp.eq.s32.totalorder %s21, 1
      %p207 = scmp.ne.s32.totalorder %s202, %s204
      %p208 = scmp.eq.s32.totalorder %s21, 0
      %p209 = por %p207, %p208
      %p210 = scmp.ne.s32.totalorder %s202, %s204
      %p211 = scmp.eq.s32.totalorder %s26, 1
      %p212 = por %p210, %p211
      %p213 = scmp.ne.s32.totalorder %s204, %s205
      %p214 = scmp.eq.s32.totalorder %s26, 0
      %p215 = por %p213, %p214
      %p216 = scmp.ne.s32.totalorder %s204, %s205
      %p217 = scmp.eq.s32.totalorder %s27, 1
      %p218 = por %p216, %p217
      %p220 = scmp.ne.s32.totalorder %s205, %s219
      %p221 = scmp.eq.s32.totalorder %s27, 0
      %p222 = por %p220, %p221
      %s224 = sadd.s32 %s223, 1
      %p227 = scmp.eq.s32.totalorder %s21, 1
      %p228 = scmp.ne.s32.totalorder %s223, %s225
      %p229 = scmp.eq.s32.totalorder %s21, 0
      %p230 = por %p228, %p229
      %p231 = scmp.ne.s32.totalorder %s223, %s225
      %p232 = scmp.eq.s32.totalorder %s26, 1
      %p233 = por %p231, %p232
      %p234 = scmp.ne.s32.totalorder %s225, %s226
      %p235 = scmp.eq.s32.totalorder %s26, 0
      %p236 = por %p234, %p235
      %p237 = scmp.ne.s32.totalorder %s225, %s226
      %p238 = scmp.eq.s32.totalorder %s27, 1
      %p239 = por %p237, %p238
      %p241 = scmp.ne.s32.totalorder %s226, %s240
      %p242 = scmp.eq.s32.totalorder %s27, 0
      %p243 = por %p241, %p242
      %s245 = sadd.s32 %s244, 1
      %p248 = scmp.eq.s32.totalorder %s21, 1
      %p249 = scmp.ne.s32.totalorder %s244, %s246
      %p250 = scmp.eq.s32.totalorder %s21, 0
      %p251 = por %p249, %p250
      %p252 = scmp.ne.s32.totalorder %s244, %s246
      %p253 = scmp.eq.s32.totalorder %s26, 1
      %p254 = por %p252, %p253
      %p255 = scmp.ne.s32.totalorder %s246, %s247
      %p256 = scmp.eq.s32.totalorder %s26, 0
      %p257 = por %p255, %p256
      %p258 = scmp.ne.s32.totalorder %s246, %s247
      %p259 = scmp.eq.s32.totalorder %s27, 1
      %p260 = por %p258, %p259
      %p262 = scmp.ne.s32.totalorder %s247, %s261
      %p263 = scmp.eq.s32.totalorder %s27, 0
      %p264 = por %p262, %p263
      %s266 = sadd.s32 %s265, 1
      %p269 = scmp.eq.s32.totalorder %s21, 1
      %p270 = scmp.ne.s32.totalorder %s265, %s267
      %p271 = scmp.eq.s32.totalorder %s21, 0
      %p272 = por %p270, %p271
      %p273 = scmp.ne.s32.totalorder %s265, %s267
      %p274 = scmp.eq.s32.totalorder %s26, 1
      %p275 = por %p273, %p274
      %p276 = scmp.ne.s32.totalorder %s267, %s268
      %p277 = scmp.eq.s32.totalorder %s26, 0
      %p278 = por %p276, %p277
      %p279 = scmp.ne.s32.totalorder %s267, %s268
      %p280 = scmp.eq.s32.totalorder %s27, 1
      %p281 = por %p279, %p280
      %p283 = scmp.ne.s32.totalorder %s268, %s282
      %p284 = scmp.eq.s32.totalorder %s27, 0
      %p285 = por %p283, %p284
      %s286 = ssub.s32 %s21, %s28
      %p287 = scmp.eq.s32.totalorder %s286, 0
      %s289 = sadd.s32 %s288, 1
      %s290 = scalar_select %p287, %s288, %s289
      %p293 = pneg %p287
      %p294 = scmp.eq.s32.totalorder %s21, 1
      %p295 = por %p293, %p294
      %p296 = scmp.ne.s32.totalorder %s288, %s291
      %p297 = scmp.eq.s32.totalorder %s21, 0
      %p298 = por %p296, %p297
      %p299 = scmp.ne.s32.totalorder %s288, %s291
      %p300 = scmp.eq.s32.totalorder %s26, 1
      %p301 = por %p299, %p300
      %p302 = scmp.ne.s32.totalorder %s291, %s292
      %p303 = scmp.eq.s32.totalorder %s26, 0
      %p304 = por %p302, %p303
      %p305 = scmp.ne.s32.totalorder %s291, %s292
      %p306 = scmp.eq.s32.totalorder %s27, 1
      %p307 = por %p305, %p306
      %p309 = scmp.ne.s32.totalorder %s292, %s308
      %p310 = scmp.eq.s32.totalorder %s27, 0
      %p311 = por %p309, %p310
      %p312 = scmp.le.s32.totalorder 1, %s21
      %p313 = scmp.lt.s32.totalorder %s21, 3
      %p314 = pnand %p312, %p313
      %p315 = pneg %p314
      // Predicated region
      $region9: #{tpu_custom_call.1} parent=5 // pred_check
        _
      $region10: #{tpu_custom_call.1} parent=5 // pred_check_branch
        %317 = sbr.rel (%p314) target = $region12
      $region11: #{tpu_custom_call.1} parent=5 // pred_region
        %s318 = ssub.s32 %s21, 1
        // Predicated region
        $region13: #{tpu_custom_call.1} parent=11 // pred_check
          %p319 = pneg %p68
        $region14: #{tpu_custom_call.1} parent=11 // pred_check_branch
          %321 = sbr.rel (%p319) target = $region16
        $region15: #{tpu_custom_call.1} parent=11 // pred_region
          _
        $region16: #{tpu_custom_call.1} parent=11 // pred_fallthru
          _
        // Predicated region
        $region17: #{tpu_custom_call.1} parent=11 // pred_check
          %p322 = pneg %p89
        $region18: #{tpu_custom_call.1} parent=11 // pred_check_branch
          %324 = sbr.rel (%p322) target = $region20
        $region19: #{tpu_custom_call.1} parent=11 // pred_region
          _
        $region20: #{tpu_custom_call.1} parent=11 // pred_fallthru
          _
        // Predicated region
        $region21: #{tpu_custom_call.1} parent=11 // pred_check
          %p325 = pneg %p110
        $region22: #{tpu_custom_call.1} parent=11 // pred_check_branch
          %327 = sbr.rel (%p325) target = $region24
        $region23: #{tpu_custom_call.1} parent=11 // pred_region
          _
        $region24: #{tpu_custom_call.1} parent=11 // pred_fallthru
          _
        // Predicated region
        $region25: #{tpu_custom_call.1} parent=11 // pred_check
          %p328 = pneg %p131
        $region26: #{tpu_custom_call.1} parent=11 // pred_check_branch
          %330 = sbr.rel (%p328) target = $region28
        $region27: #{tpu_custom_call.1} parent=11 // pred_region
          _
        $region28: #{tpu_custom_call.1} parent=11 // pred_fallthru
          _
        // Predicated region
        $region29: #{tpu_custom_call.1} parent=11 // pred_check
          %p331 = pneg %p152
        $region30: #{tpu_custom_call.1} parent=11 // pred_check_branch
          %333 = sbr.rel (%p331) target = $region32
        $region31: #{tpu_custom_call.1} parent=11 // pred_region
          _
        $region32: #{tpu_custom_call.1} parent=11 // pred_fallthru
          _
        // Predicated region
        $region33: #{tpu_custom_call.1} parent=11 // pred_check
          %p334 = pneg %p173
        $region34: #{tpu_custom_call.1} parent=11 // pred_check_branch
          %336 = sbr.rel (%p334) target = $region36
        $region35: #{tpu_custom_call.1} parent=11 // pred_region
          _
        $region36: #{tpu_custom_call.1} parent=11 // pred_fallthru
          _
        // Predicated region
        $region37: #{tpu_custom_call.1} parent=11 // pred_check
          %p337 = pneg %p194
        $region38: #{tpu_custom_call.1} parent=11 // pred_check_branch
          %339 = sbr.rel (%p337) target = $region40
        $region39: #{tpu_custom_call.1} parent=11 // pred_region
          _
        $region40: #{tpu_custom_call.1} parent=11 // pred_fallthru
          _
        // Predicated region
        $region41: #{tpu_custom_call.1} parent=11 // pred_check
          %p340 = pneg %p215
        $region42: #{tpu_custom_call.1} parent=11 // pred_check_branch
          %342 = sbr.rel (%p340) target = $region44
        $region43: #{tpu_custom_call.1} parent=11 // pred_region
          _
        $region44: #{tpu_custom_call.1} parent=11 // pred_fallthru
          _
        // Predicated region
        $region45: #{tpu_custom_call.1} parent=11 // pred_check
          %p343 = pneg %p236
        $region46: #{tpu_custom_call.1} parent=11 // pred_check_branch
          %345 = sbr.rel (%p343) target = $region48
        $region47: #{tpu_custom_call.1} parent=11 // pred_region
          _
        $region48: #{tpu_custom_call.1} parent=11 // pred_fallthru
          _
        // Predicated region
        $region49: #{tpu_custom_call.1} parent=11 // pred_check
          %p346 = pneg %p257
        $region50: #{tpu_custom_call.1} parent=11 // pred_check_branch
          %348 = sbr.rel (%p346) target = $region52
        $region51: #{tpu_custom_call.1} parent=11 // pred_region
          _
        $region52: #{tpu_custom_call.1} parent=11 // pred_fallthru
          _
        // Predicated region
        $region53: #{tpu_custom_call.1} parent=11 // pred_check
          %p349 = pneg %p278
        $region54: #{tpu_custom_call.1} parent=11 // pred_check_branch
          %351 = sbr.rel (%p349) target = $region56
        $region55: #{tpu_custom_call.1} parent=11 // pred_region
          _
        $region56: #{tpu_custom_call.1} parent=11 // pred_fallthru
          _
      $region12: #{tpu_custom_call.1} parent=5 // pred_fallthru
        _
      %p352 = scmp.lt.s32.totalorder %s21, 2
      // Predicated region
      $region57: #{tpu_custom_call.1} parent=5 // pred_check
        %p353 = pneg %p352
      $region58: #{tpu_custom_call.1} parent=5 // pred_check_branch
        %355 = sbr.rel (%p353) target = $region60
      $region59: #{tpu_custom_call.1} parent=5 // pred_region
        // Predicated region
        $region61: #{tpu_custom_call.1} parent=59 // pred_check
          %p356 = pneg %p41
        $region62: #{tpu_custom_call.1} parent=59 // pred_check_branch
          %358 = sbr.rel (%p356) target = $region64
        $region63: #{tpu_custom_call.1} parent=59 // pred_region
          %p359 = scmp.lt.s32.totalorder %s21, 1
          %s360 = scalar_select %p359, %s21, 1
          %s361 = smul.addr %s360, 2
          %s362 = smul.addr %s361, 8
          %s363 = scalar_lea.vmem %s0, %s362
        $region64: #{tpu_custom_call.1} parent=59 // pred_fallthru
          _
      $region60: #{tpu_custom_call.1} parent=5 // pred_fallthru
        _
      %p364 = scmp.le.s32.totalorder 1, %s21
      %p365 = scmp.lt.s32.totalorder %s21, 3
      %p366 = pnand %p364, %p365
      %p367 = pneg %p366
      // Predicated region
      $region65: #{tpu_custom_call.1} parent=5 // pred_check
        _
      $region66: #{tpu_custom_call.1} parent=5 // pred_check_branch
        %369 = sbr.rel (%p366) target = $region68
      $region67: #{tpu_custom_call.1} parent=5 // pred_region
        %s370 = ssub.s32 %s21, 1
        %p371 = scmp.lt.s32.totalorder %s26, 1
        %s372 = scalar_select %p371, %s26, 1
        %s373 = smul.addr %s372, 2
        %s374 = smul.addr %s373, 8
        %s375 = scalar_lea.vmem %s0, %s374
        %p376 = pneg %p47
        %p377 = pneg %p44
        %p378 = pneg %p68
        %p379 = pneg %p65
        %p380 = pneg %p89
        %p381 = pneg %p86
        %p382 = pneg %p110
        %p383 = pneg %p107
        %p384 = pneg %p131
        %p385 = pneg %p128
        %p386 = pneg %p152
        %p387 = pneg %p149
        %p388 = pneg %p173
        %p389 = pneg %p170
        %p390 = pneg %p194
        %p391 = pneg %p191
        %p392 = pneg %p215
        %p393 = pneg %p212
        %p394 = pneg %p236
        %p395 = pneg %p233
        %p396 = pneg %p257
        %p397 = pneg %p254
        %p398 = pneg %p278
        %p399 = pneg %p275
        %p400 = pneg %p304
        %p401 = pneg %p301
        %s402 = sand.u32 %s291, 1
        %s403 = scalar_lea.sflag [#allocation3], %s402
        %s404 = sand.u32 %s291, 1
        %s405 = smul.addr %s404, 16
        %s406 = scalar_lea.vmem [#allocation2], %s405
        %p407 = scmp.lt.s32.totalorder %s26, 1
        %s408 = scalar_select %p407, %s26, 1
        %s409 = smul.addr %s408, 2
        %s410 = smul.addr %s409, 8
        %s411 = scalar_lea.vmem %s0, %s410
        %v413 = vld [vmem:[%s411] sm:$0xff]
        %v414 = vld [vmem:[%s411 + $0x8] sm:$0xff]
        %v415 = vpack.c.bf16 %v413, %v413
        %v416 = vpack.c.bf16 %v414, %v414
        %v417 = vld [vmem:[%s1] sm:$0x3]
        %v418 = vld [vmem:[%s4] sm:$0xf]
        %420 = vset.pattern.permute.xlu0 0
        %421 = vperm.xlu0 %420, %v418
        %v422 = vpop.permute.xlu0 %421
        %vm424 = vcmask 64512
        %v426 = vsel %vm424, %v417, 0
        %vm428 = vcmask 1043456
        %v430 = vsel %vm428, %v415, 0
        %v433 = vsel %vm428, %v416, 0
        %435 = vmatprep.subr.bf16.mxu0 %v433
        %436 = vmatpush1.bf16.msra.mxu0 %v430
        %437 = vmatprep.subr.bf16.mxu0 0
        %438 = vmatpush1.bf16.msra.mxu0 0
        %439 = vmatprep.subr.bf16.mxu0 0
        %440 = vmatpush1.bf16.msra.mxu0 0
        %441 = vmatprep.subr.bf16.mxu0 0
        %442 = vmatpush1.bf16.msra.mxu0 0
        %443 = vmatprep.subr.bf16.mxu0 0
        %444 = vmatpush1.bf16.msra.mxu0 0
        %445 = vmatprep.subr.bf16.mxu0 0
        %446 = vmatpush1.bf16.msra.mxu0 0
        %447 = vmatprep.subr.bf16.mxu0 0
        %448 = vmatpush1.bf16.msra.mxu0 0
        %449 = vmatprep.subr.bf16.mxu0 0
        %450 = vmatpush1.bf16.msra.mxu0 0
        %451 = vmatprep.subr.bf16.mxu0 0
        %452 = vmatpush1.bf16.msra.mxu0 0
        %453 = vmatprep.subr.bf16.mxu0 0
        %454 = vmatpush1.bf16.msra.mxu0 0
        %455 = vmatprep.subr.bf16.mxu0 0
        %456 = vmatpush1.bf16.msra.mxu0 0
        %457 = vmatprep.subr.bf16.mxu0 0
        %458 = vmatpush1.bf16.msra.mxu0 0
        %459 = vmatprep.subr.bf16.mxu0 0
        %460 = vmatpush1.bf16.msra.mxu0 0
        %461 = vmatprep.subr.bf16.mxu0 0
        %462 = vmatpush1.bf16.msra.mxu0 0
        %463 = vmatprep.subr.bf16.mxu0 0
        %464 = vmatpush1.bf16.msra.mxu0 0
        %465 = vmatprep.subr.bf16.mxu0 0
        %466 = vmatpush1.bf16.msra.mxu0 0
        %467 = vmatprep.mubr.bf16.mxu0 0
        %468 = vmatmul.mubr.bf16.gmra.mrb[0].mxu0 %v426
        %v469 = vpop.f32.mrb[0].mxu0
        %v470 = vadd.f32 %v422, %v469
        %v471 = vpop.f32.mrb[0].mxu0
        %v472 = vadd.f32 %v422, %v471
        %v473 = vpop.f32.mrb[0].mxu0
        %v474 = vpop.f32.mrb[0].mxu0
        %475 = vdwg.mxu0
        %vm476 = vcmp.gt.f32.partialorder %v470, 0.0
        %vm477 = vcmp.gt.f32.partialorder %v472, 0.0
        %v478 = vld [vmem:[%s5] sm:$0xf]
        %480 = vset.pattern.permute.xlu0 0
        %481 = vperm.xlu0 %480, %v478
        %v482 = vpop.permute.xlu0 %481
        %v484 = vmul.f32 %v482, %v470
        %v485 = vmul.f32 %v482, %v472
        %v486 = vsel %vm476, %v470, %v484
        %v487 = vsel %vm477, %v472, %v485
        %v488 = vlaneseq
        %v489 = vand.u32 %v488, 127
        %v490 = vadd.s32 %v489, 128
        %v491 = vand.u32 %v489, 15
        %v492 = vand.u32 %v490, 15
        %v493 = vshra.s32 %v489, 4
        %v494 = vshra.s32 %v490, 4
        %vm495 = vcmp.ge.s32.totalorder %v493, 1
        %vm496 = vcmp.ge.s32.totalorder %v494, 1
        %vm497 = vcmp.le.s32.totalorder %v493, 14
        %vm498 = vcmp.le.s32.totalorder %v494, 14
        %vm499 = vcmp.ge.s32.totalorder %v491, 1
        %vm500 = vcmp.ge.s32.totalorder %v492, 1
        %vm501 = vcmp.le.s32.totalorder %v491, 14
        %vm502 = vcmp.le.s32.totalorder %v492, 14
        %503 = vrot.lane.b32.xlu0 %v486, 17
        %v504 = vpop.permute.xlu0 %503
        %505 = vrot.lane.b32.xlu0 %v487, 17
        %v506 = vpop.permute.xlu0 %505
        %vm507 = vcmp.lt.s32.totalorder %v489, 17
        %v508 = vsel %vm507, %v504, %v506
        %v509 = vsel %vm507, %v506, %v504
        %vm510 = vmand %vm495, %vm499
        %vm511 = vmand %vm496, %vm500
        %v512 = vsel %vm510, 1, 0
        %v513 = vsel %vm511, 1, 0
        %vm514 = vcmp.eq.s32.totalorder %v512, 1
        %vm515 = vcmp.eq.s32.totalorder %v513, 1
        %v516 = vsel %vm514, %v509, 0.0
        %v517 = vsel %vm515, %v508, 0.0
        %v518 = vld [vmem:[%s2] sm:$0x3]
        %v519 = vpack.c.bf16 %v516, %v516
        %v520 = vpack.c.bf16 %v517, %v517
        %521 = vrot.lane.b32.xlu0 %v486, 16
        %v522 = vpop.permute.xlu0 %521
        %523 = vrot.lane.b32.xlu0 %v487, 16
        %v524 = vpop.permute.xlu0 %523
        %vm525 = vcmp.lt.s32.totalorder %v489, 16
        %v526 = vsel %vm525, %v522, %v524
        %v527 = vsel %vm525, %v524, %v522
        %v528 = vsel %vm495, 1, 0
        %v529 = vsel %vm496, 1, 0
        %vm530 = vcmp.eq.s32.totalorder %v528, 1
        %vm531 = vcmp.eq.s32.totalorder %v529, 1
        %v532 = vsel %vm530, %v527, 0.0
        %v533 = vsel %vm531, %v526, 0.0
        %s534 = scalar_lea.vmem %s2, 2
        %v535 = vld [vmem:[%s534] sm:$0x3]
        %v536 = vpack.c.bf16 %v532, %v532
        %v537 = vpack.c.bf16 %v533, %v533
        %vm538 = vcmask 31744
        %v540 = vsel %vm538, %v535, 0
        %vm542 = vcmask 1041408
        %v544 = vsel %vm542, %v536, 0
        %v547 = vsel %vm542, %v537, 0
        %549 = vmatprep.subr.bf16.mxu0 %v547
        %550 = vmatpush1.bf16.msra.mxu0 %v544
        %551 = vmatprep.subr.bf16.mxu0 0
        %552 = vmatpush1.bf16.msra.mxu0 0
        %553 = vmatprep.subr.bf16.mxu0 0
        %554 = vmatpush1.bf16.msra.mxu0 0
        %555 = vmatprep.subr.bf16.mxu0 0
        %556 = vmatpush1.bf16.msra.mxu0 0
        %557 = vmatprep.subr.bf16.mxu0 0
        %558 = vmatpush1.bf16.msra.mxu0 0
        %559 = vmatprep.subr.bf16.mxu0 0
        %560 = vmatpush1.bf16.msra.mxu0 0
        %561 = vmatprep.subr.bf16.mxu0 0
        %562 = vmatpush1.bf16.msra.mxu0 0
        %563 = vmatprep.subr.bf16.mxu0 0
        %564 = vmatpush1.bf16.msra.mxu0 0
        %565 = vmatprep.subr.bf16.mxu0 0
        %566 = vmatpush1.bf16.msra.mxu0 0
        %567 = vmatprep.subr.bf16.mxu0 0
        %568 = vmatpush1.bf16.msra.mxu0 0
        %569 = vmatprep.subr.bf16.mxu0 0
        %570 = vmatpush1.bf16.msra.mxu0 0
        %571 = vmatprep.subr.bf16.mxu0 0
        %572 = vmatpush1.bf16.msra.mxu0 0
        %573 = vmatprep.subr.bf16.mxu0 0
        %574 = vmatpush1.bf16.msra.mxu0 0
        %575 = vmatprep.subr.bf16.mxu0 0
        %576 = vmatpush1.bf16.msra.mxu0 0
        %577 = vmatprep.subr.bf16.mxu0 0
        %578 = vmatpush1.bf16.msra.mxu0 0
        %579 = vmatprep.subr.bf16.mxu0 0
        %580 = vmatpush1.bf16.msra.mxu0 0
        %581 = vmatprep.mubr.bf16.mxu0 0
        %582 = vmatmul.mubr.bf16.gmra.mrb[0].mxu0 %v540
        %v583 = vpop.f32.mrb[0].mxu0
        %v584 = vadd.f32 0.0, %v583
        %v585 = vpop.f32.mrb[0].mxu0
        %v586 = vadd.f32 0.0, %v585
        %v587 = vpop.f32.mrb[0].mxu0
        %v588 = vpop.f32.mrb[0].mxu0
        %589 = vdwg.mxu0
        %v591 = vsel %vm538, %v518, 0
        %v594 = vsel %vm542, %v519, 0
        %v597 = vsel %vm542, %v520, 0
        %599 = vmatprep.subr.bf16.mxu0 %v597
        %600 = vmatpush1.bf16.msra.mxu0 %v594
        %601 = vmatprep.subr.bf16.mxu0 0
        %602 = vmatpush1.bf16.msra.mxu0 0
        %603 = vmatprep.subr.bf16.mxu0 0
        %604 = vmatpush1.bf16.msra.mxu0 0
        %605 = vmatprep.subr.bf16.mxu0 0
        %606 = vmatpush1.bf16.msra.mxu0 0
        %607 = vmatprep.subr.bf16.mxu0 0
        %608 = vmatpush1.bf16.msra.mxu0 0
        %609 = vmatprep.subr.bf16.mxu0 0
        %610 = vmatpush1.bf16.msra.mxu0 0
        %611 = vmatprep.subr.bf16.mxu0 0
        %612 = vmatpush1.bf16.msra.mxu0 0
        %613 = vmatprep.subr.bf16.mxu0 0
        %614 = vmatpush1.bf16.msra.mxu0 0
        %615 = vmatprep.subr.bf16.mxu0 0
        %616 = vmatpush1.bf16.msra.mxu0 0
        %617 = vmatprep.subr.bf16.mxu0 0
        %618 = vmatpush1.bf16.msra.mxu0 0
        %619 = vmatprep.subr.bf16.mxu0 0
        %620 = vmatpush1.bf16.msra.mxu0 0
        %621 = vmatprep.subr.bf16.mxu0 0
        %622 = vmatpush1.bf16.msra.mxu0 0
        %623 = vmatprep.subr.bf16.mxu0 0
        %624 = vmatpush1.bf16.msra.mxu0 0
        %625 = vmatprep.subr.bf16.mxu0 0
        %626 = vmatpush1.bf16.msra.mxu0 0
        %627 = vmatprep.subr.bf16.mxu0 0
        %628 = vmatpush1.bf16.msra.mxu0 0
        %629 = vmatprep.subr.bf16.mxu0 0
        %630 = vmatpush1.bf16.msra.mxu0 0
        %631 = vmatprep.mubr.bf16.mxu0 0
        %632 = vmatmul.mubr.bf16.gmra.mrb[0].mxu0 %v591
        %v633 = vpop.f32.mrb[0].mxu0
        %v634 = vadd.f32 %v584, %v633
        %v635 = vpop.f32.mrb[0].mxu0
        %v636 = vadd.f32 %v586, %v635
        %v637 = vpop.f32.mrb[0].mxu0
        %v638 = vpop.f32.mrb[0].mxu0
        %639 = vdwg.mxu0
        %640 = vrot.lane.b32.xlu0 %v486, 15
        %v641 = vpop.permute.xlu0 %640
        %642 = vrot.lane.b32.xlu0 %v487, 15
        %v643 = vpop.permute.xlu0 %642
        %vm644 = vcmp.lt.s32.totalorder %v489, 15
        %v645 = vsel %vm644, %v641, %v643
        %v646 = vsel %vm644, %v643, %v641
        %vm647 = vmand %vm495, %vm501
        %vm648 = vmand %vm496, %vm502
        %v649 = vsel %vm647, 1, 0
        %v650 = vsel %vm648, 1, 0
        %vm651 = vcmp.eq.s32.totalorder %v649, 1
        %vm652 = vcmp.eq.s32.totalorder %v650, 1
        %v653 = vsel %vm651, %v646, 0.0
        %v654 = vsel %vm652, %v645, 0.0
        %s655 = scalar_lea.vmem %s2, 4
        %v656 = vld [vmem:[%s655] sm:$0x3]
        %v657 = vpack.c.bf16 %v653, %v653
        %v658 = vpack.c.bf16 %v654, %v654
        %v660 = vsel %vm538, %v656, 0
        %v663 = vsel %vm542, %v657, 0
        %v666 = vsel %vm542, %v658, 0
        %668 = vmatprep.subr.bf16.mxu0 %v666
        %669 = vmatpush1.bf16.msra.mxu0 %v663
        %670 = vmatprep.subr.bf16.mxu0 0
        %671 = vmatpush1.bf16.msra.mxu0 0
        %672 = vmatprep.subr.bf16.mxu0 0
        %673 = vmatpush1.bf16.msra.mxu0 0
        %674 = vmatprep.subr.bf16.mxu0 0
        %675 = vmatpush1.bf16.msra.mxu0 0
        %676 = vmatprep.subr.bf16.mxu0 0
        %677 = vmatpush1.bf16.msra.mxu0 0
        %678 = vmatprep.subr.bf16.mxu0 0
        %679 = vmatpush1.bf16.msra.mxu0 0
        %680 = vmatprep.subr.bf16.mxu0 0
        %681 = vmatpush1.bf16.msra.mxu0 0
        %682 = vmatprep.subr.bf16.mxu0 0
        %683 = vmatpush1.bf16.msra.mxu0 0
        %684 = vmatprep.subr.bf16.mxu0 0
        %685 = vmatpush1.bf16.msra.mxu0 0
        %686 = vmatprep.subr.bf16.mxu0 0
        %687 = vmatpush1.bf16.msra.mxu0 0
        %688 = vmatprep.subr.bf16.mxu0 0
        %689 = vmatpush1.bf16.msra.mxu0 0
        %690 = vmatprep.subr.bf16.mxu0 0
        %691 = vmatpush1.bf16.msra.mxu0 0
        %692 = vmatprep.subr.bf16.mxu0 0
        %693 = vmatpush1.bf16.msra.mxu0 0
        %694 = vmatprep.subr.bf16.mxu0 0
        %695 = vmatpush1.bf16.msra.mxu0 0
        %696 = vmatprep.subr.bf16.mxu0 0
        %697 = vmatpush1.bf16.msra.mxu0 0
        %698 = vmatprep.subr.bf16.mxu0 0
        %699 = vmatpush1.bf16.msra.mxu0 0
        %700 = vmatprep.mubr.bf16.mxu0 0
        %701 = vmatmul.mubr.bf16.gmra.mrb[0].mxu0 %v660
        %v702 = vpop.f32.mrb[0].mxu0
        %v703 = vadd.f32 0.0, %v702
        %v704 = vpop.f32.mrb[0].mxu0
        %v705 = vadd.f32 0.0, %v704
        %v706 = vpop.f32.mrb[0].mxu0
        %v707 = vpop.f32.mrb[0].mxu0
        %708 = vdwg.mxu0
        %v709 = vadd.f32 %v634, %v703
        %v710 = vadd.f32 %v636, %v705
        %711 = vrot.lane.b32.xlu0 %v486, 1
        %v712 = vpop.permute.xlu0 %711
        %713 = vrot.lane.b32.xlu0 %v487, 1
        %v714 = vpop.permute.xlu0 %713
        %vm715 = vcmp.lt.s32.totalorder %v489, 1
        %v716 = vsel %vm715, %v712, %v714
        %v717 = vsel %vm715, %v714, %v712
        %v718 = vsel %vm499, 1, 0
        %v719 = vsel %vm500, 1, 0
        %vm720 = vcmp.eq.s32.totalorder %v718, 1
        %vm721 = vcmp.eq.s32.totalorder %v719, 1
        %v722 = vsel %vm720, %v717, 0.0
        %v723 = vsel %vm721, %v716, 0.0
        %s724 = scalar_lea.vmem %s2, 6
        %v725 = vld [vmem:[%s724] sm:$0x3]
        %v726 = vpack.c.bf16 %v722, %v722
        %v727 = vpack.c.bf16 %v723, %v723
        %v729 = vsel %vm538, %v725, 0
        %v732 = vsel %vm542, %v726, 0
        %v735 = vsel %vm542, %v727, 0
        %737 = vmatprep.subr.bf16.mxu0 %v735
        %738 = vmatpush1.bf16.msra.mxu0 %v732
        %739 = vmatprep.subr.bf16.mxu0 0
        %740 = vmatpush1.bf16.msra.mxu0 0
        %741 = vmatprep.subr.bf16.mxu0 0
        %742 = vmatpush1.bf16.msra.mxu0 0
        %743 = vmatprep.subr.bf16.mxu0 0
        %744 = vmatpush1.bf16.msra.mxu0 0
        %745 = vmatprep.subr.bf16.mxu0 0
        %746 = vmatpush1.bf16.msra.mxu0 0
        %747 = vmatprep.subr.bf16.mxu0 0
        %748 = vmatpush1.bf16.msra.mxu0 0
        %749 = vmatprep.subr.bf16.mxu0 0
        %750 = vmatpush1.bf16.msra.mxu0 0
        %751 = vmatprep.subr.bf16.mxu0 0
        %752 = vmatpush1.bf16.msra.mxu0 0
        %753 = vmatprep.subr.bf16.mxu0 0
        %754 = vmatpush1.bf16.msra.mxu0 0
        %755 = vmatprep.subr.bf16.mxu0 0
        %756 = vmatpush1.bf16.msra.mxu0 0
        %757 = vmatprep.subr.bf16.mxu0 0
        %758 = vmatpush1.bf16.msra.mxu0 0
        %759 = vmatprep.subr.bf16.mxu0 0
        %760 = vmatpush1.bf16.msra.mxu0 0
        %761 = vmatprep.subr.bf16.mxu0 0
        %762 = vmatpush1.bf16.msra.mxu0 0
        %763 = vmatprep.subr.bf16.mxu0 0
        %764 = vmatpush1.bf16.msra.mxu0 0
        %765 = vmatprep.subr.bf16.mxu0 0
        %766 = vmatpush1.bf16.msra.mxu0 0
        %767 = vmatprep.subr.bf16.mxu0 0
        %768 = vmatpush1.bf16.msra.mxu0 0
        %769 = vmatprep.mubr.bf16.mxu0 0
        %770 = vmatmul.mubr.bf16.gmra.mrb[0].mxu0 %v729
        %v771 = vpop.f32.mrb[0].mxu0
        %v772 = vadd.f32 0.0, %v771
        %v773 = vpop.f32.mrb[0].mxu0
        %v774 = vadd.f32 0.0, %v773
        %v775 = vpop.f32.mrb[0].mxu0
        %v776 = vpop.f32.mrb[0].mxu0
        %777 = vdwg.mxu0
        %v778 = vadd.f32 %v709, %v772
        %v779 = vadd.f32 %v710, %v774
        %s780 = scalar_lea.vmem %s2, 8
        %v781 = vld [vmem:[%s780] sm:$0x3]
        %v782 = vpack.c.bf16 %v486, %v486
        %v783 = vpack.c.bf16 %v487, %v487
        %v785 = vsel %vm538, %v781, 0
        %v788 = vsel %vm542, %v782, 0
        %v791 = vsel %vm542, %v783, 0
        %793 = vmatprep.subr.bf16.mxu0 %v791
        %794 = vmatpush1.bf16.msra.mxu0 %v788
        %795 = vmatprep.subr.bf16.mxu0 0
        %796 = vmatpush1.bf16.msra.mxu0 0
        %797 = vmatprep.subr.bf16.mxu0 0
        %798 = vmatpush1.bf16.msra.mxu0 0
        %799 = vmatprep.subr.bf16.mxu0 0
        %800 = vmatpush1.bf16.msra.mxu0 0
        %801 = vmatprep.subr.bf16.mxu0 0
        %802 = vmatpush1.bf16.msra.mxu0 0
        %803 = vmatprep.subr.bf16.mxu0 0
        %804 = vmatpush1.bf16.msra.mxu0 0
        %805 = vmatprep.subr.bf16.mxu0 0
        %806 = vmatpush1.bf16.msra.mxu0 0
        %807 = vmatprep.subr.bf16.mxu0 0
        %808 = vmatpush1.bf16.msra.mxu0 0
        %809 = vmatprep.subr.bf16.mxu0 0
        %810 = vmatpush1.bf16.msra.mxu0 0
        %811 = vmatprep.subr.bf16.mxu0 0
        %812 = vmatpush1.bf16.msra.mxu0 0
        %813 = vmatprep.subr.bf16.mxu0 0
        %814 = vmatpush1.bf16.msra.mxu0 0
        %815 = vmatprep.subr.bf16.mxu0 0
        %816 = vmatpush1.bf16.msra.mxu0 0
        %817 = vmatprep.subr.bf16.mxu0 0
        %818 = vmatpush1.bf16.msra.mxu0 0
        %819 = vmatprep.subr.bf16.mxu0 0
        %820 = vmatpush1.bf16.msra.mxu0 0
        %821 = vmatprep.subr.bf16.mxu0 0
        %822 = vmatpush1.bf16.msra.mxu0 0
        %823 = vmatprep.subr.bf16.mxu0 0
        %824 = vmatpush1.bf16.msra.mxu0 0
        %825 = vmatprep.mubr.bf16.mxu0 0
        %826 = vmatmul.mubr.bf16.gmra.mrb[0].mxu0 %v785
        %v827 = vpop.f32.mrb[0].mxu0
        %v828 = vadd.f32 0.0, %v827
        %v829 = vpop.f32.mrb[0].mxu0
        %v830 = vadd.f32 0.0, %v829
        %v831 = vpop.f32.mrb[0].mxu0
        %v832 = vpop.f32.mrb[0].mxu0
        %833 = vdwg.mxu0
        %v834 = vadd.f32 %v778, %v828
        %v835 = vadd.f32 %v779, %v830
        %836 = vrot.lane.b32.xlu0 %v486, 127
        %v837 = vpop.permute.xlu0 %836
        %838 = vrot.lane.b32.xlu0 %v487, 127
        %v839 = vpop.permute.xlu0 %838
        %vm840 = vcmp.lt.s32.totalorder %v489, 127
        %v841 = vsel %vm840, %v837, %v839
        %v842 = vsel %vm840, %v839, %v837
        %v843 = vsel %vm501, 1, 0
        %v844 = vsel %vm502, 1, 0
        %vm845 = vcmp.eq.s32.totalorder %v843, 1
        %vm846 = vcmp.eq.s32.totalorder %v844, 1
        %v847 = vsel %vm845, %v841, 0.0
        %v848 = vsel %vm846, %v842, 0.0
        %s849 = scalar_lea.vmem %s2, 10
        %v850 = vld [vmem:[%s849] sm:$0x3]
        %v851 = vpack.c.bf16 %v847, %v847
        %v852 = vpack.c.bf16 %v848, %v848
        %v854 = vsel %vm538, %v850, 0
        %v857 = vsel %vm542, %v851, 0
        %v860 = vsel %vm542, %v852, 0
        %862 = vmatprep.subr.bf16.mxu0 %v860
        %863 = vmatpush1.bf16.msra.mxu0 %v857
        %864 = vmatprep.subr.bf16.mxu0 0
        %865 = vmatpush1.bf16.msra.mxu0 0
        %866 = vmatprep.subr.bf16.mxu0 0
        %867 = vmatpush1.bf16.msra.mxu0 0
        %868 = vmatprep.subr.bf16.mxu0 0
        %869 = vmatpush1.bf16.msra.mxu0 0
        %870 = vmatprep.subr.bf16.mxu0 0
        %871 = vmatpush1.bf16.msra.mxu0 0
        %872 = vmatprep.subr.bf16.mxu0 0
        %873 = vmatpush1.bf16.msra.mxu0 0
        %874 = vmatprep.subr.bf16.mxu0 0
        %875 = vmatpush1.bf16.msra.mxu0 0
        %876 = vmatprep.subr.bf16.mxu0 0
        %877 = vmatpush1.bf16.msra.mxu0 0
        %878 = vmatprep.subr.bf16.mxu0 0
        %879 = vmatpush1.bf16.msra.mxu0 0
        %880 = vmatprep.subr.bf16.mxu0 0
        %881 = vmatpush1.bf16.msra.mxu0 0
        %882 = vmatprep.subr.bf16.mxu0 0
        %883 = vmatpush1.bf16.msra.mxu0 0
        %884 = vmatprep.subr.bf16.mxu0 0
        %885 = vmatpush1.bf16.msra.mxu0 0
        %886 = vmatprep.subr.bf16.mxu0 0
        %887 = vmatpush1.bf16.msra.mxu0 0
        %888 = vmatprep.subr.bf16.mxu0 0
        %889 = vmatpush1.bf16.msra.mxu0 0
        %890 = vmatprep.subr.bf16.mxu0 0
        %891 = vmatpush1.bf16.msra.mxu0 0
        %892 = vmatprep.subr.bf16.mxu0 0
        %893 = vmatpush1.bf16.msra.mxu0 0
        %894 = vmatprep.mubr.bf16.mxu0 0
        %895 = vmatmul.mubr.bf16.gmra.mrb[0].mxu0 %v854
        %v896 = vpop.f32.mrb[0].mxu0
        %v897 = vadd.f32 0.0, %v896
        %v898 = vpop.f32.mrb[0].mxu0
        %v899 = vadd.f32 0.0, %v898
        %v900 = vpop.f32.mrb[0].mxu0
        %v901 = vpop.f32.mrb[0].mxu0
        %902 = vdwg.mxu0
        %v903 = vadd.f32 %v834, %v897
        %v904 = vadd.f32 %v835, %v899
        %905 = vrot.lane.b32.xlu0 %v486, 113
        %v906 = vpop.permute.xlu0 %905
        %907 = vrot.lane.b32.xlu0 %v487, 113
        %v908 = vpop.permute.xlu0 %907
        %vm909 = vcmp.lt.s32.totalorder %v489, 113
        %v910 = vsel %vm909, %v906, %v908
        %v911 = vsel %vm909, %v908, %v906
        %vm912 = vmand %vm497, %vm499
        %vm913 = vmand %vm498, %vm500
        %v914 = vsel %vm912, 1, 0
        %v915 = vsel %vm913, 1, 0
        %vm916 = vcmp.eq.s32.totalorder %v914, 1
        %vm917 = vcmp.eq.s32.totalorder %v915, 1
        %v918 = vsel %vm916, %v910, 0.0
        %v919 = vsel %vm917, %v911, 0.0
        %s920 = scalar_lea.vmem %s2, 12
        %v921 = vld [vmem:[%s920] sm:$0x3]
        %v922 = vpack.c.bf16 %v918, %v918
        %v923 = vpack.c.bf16 %v919, %v919
        %v925 = vsel %vm538, %v921, 0
        %v928 = vsel %vm542, %v922, 0
        %v931 = vsel %vm542, %v923, 0
        %933 = vmatprep.subr.bf16.mxu0 %v931
        %934 = vmatpush1.bf16.msra.mxu0 %v928
        %935 = vmatprep.subr.bf16.mxu0 0
        %936 = vmatpush1.bf16.msra.mxu0 0
        %937 = vmatprep.subr.bf16.mxu0 0
        %938 = vmatpush1.bf16.msra.mxu0 0
        %939 = vmatprep.subr.bf16.mxu0 0
        %940 = vmatpush1.bf16.msra.mxu0 0
        %941 = vmatprep.subr.bf16.mxu0 0
        %942 = vmatpush1.bf16.msra.mxu0 0
        %943 = vmatprep.subr.bf16.mxu0 0
        %944 = vmatpush1.bf16.msra.mxu0 0
        %945 = vmatprep.subr.bf16.mxu0 0
        %946 = vmatpush1.bf16.msra.mxu0 0
        %947 = vmatprep.subr.bf16.mxu0 0
        %948 = vmatpush1.bf16.msra.mxu0 0
        %949 = vmatprep.subr.bf16.mxu0 0
        %950 = vmatpush1.bf16.msra.mxu0 0
        %951 = vmatprep.subr.bf16.mxu0 0
        %952 = vmatpush1.bf16.msra.mxu0 0
        %953 = vmatprep.subr.bf16.mxu0 0
        %954 = vmatpush1.bf16.msra.mxu0 0
        %955 = vmatprep.subr.bf16.mxu0 0
        %956 = vmatpush1.bf16.msra.mxu0 0
        %957 = vmatprep.subr.bf16.mxu0 0
        %958 = vmatpush1.bf16.msra.mxu0 0
        %959 = vmatprep.subr.bf16.mxu0 0
        %960 = vmatpush1.bf16.msra.mxu0 0
        %961 = vmatprep.subr.bf16.mxu0 0
        %962 = vmatpush1.bf16.msra.mxu0 0
        %963 = vmatprep.subr.bf16.mxu0 0
        %964 = vmatpush1.bf16.msra.mxu0 0
        %965 = vmatprep.mubr.bf16.mxu0 0
        %966 = vmatmul.mubr.bf16.gmra.mrb[0].mxu0 %v925
        %v967 = vpop.f32.mrb[0].mxu0
        %v968 = vadd.f32 0.0, %v967
        %v969 = vpop.f32.mrb[0].mxu0
        %v970 = vadd.f32 0.0, %v969
        %v971 = vpop.f32.mrb[0].mxu0
        %v972 = vpop.f32.mrb[0].mxu0
        %973 = vdwg.mxu0
        %v974 = vadd.f32 %v903, %v968
        %v975 = vadd.f32 %v904, %v970
        %976 = vrot.lane.b32.xlu0 %v486, 112
        %v977 = vpop.permute.xlu0 %976
        %978 = vrot.lane.b32.xlu0 %v487, 112
        %v979 = vpop.permute.xlu0 %978
        %vm980 = vcmp.lt.s32.totalorder %v489, 112
        %v981 = vsel %vm980, %v977, %v979
        %v982 = vsel %vm980, %v979, %v977
        %v983 = vsel %vm497, 1, 0
        %v984 = vsel %vm498, 1, 0
        %vm985 = vcmp.eq.s32.totalorder %v983, 1
        %vm986 = vcmp.eq.s32.totalorder %v984, 1
        %v987 = vsel %vm985, %v981, 0.0
        %v988 = vsel %vm986, %v982, 0.0
        %s989 = scalar_lea.vmem %s2, 14
        %v990 = vld [vmem:[%s989] sm:$0x3]
        %v991 = vpack.c.bf16 %v987, %v987
        %v992 = vpack.c.bf16 %v988, %v988
        %v994 = vsel %vm538, %v990, 0
        %v997 = vsel %vm542, %v991, 0
        %v1000 = vsel %vm542, %v992, 0
        %1002 = vmatprep.subr.bf16.mxu0 %v1000
        %1003 = vmatpush1.bf16.msra.mxu0 %v997
        %1004 = vmatprep.subr.bf16.mxu0 0
        %1005 = vmatpush1.bf16.msra.mxu0 0
        %1006 = vmatprep.subr.bf16.mxu0 0
        %1007 = vmatpush1.bf16.msra.mxu0 0
        %1008 = vmatprep.subr.bf16.mxu0 0
        %1009 = vmatpush1.bf16.msra.mxu0 0
        %1010 = vmatprep.subr.bf16.mxu0 0
        %1011 = vmatpush1.bf16.msra.mxu0 0
        %1012 = vmatprep.subr.bf16.mxu0 0
        %1013 = vmatpush1.bf16.msra.mxu0 0
        %1014 = vmatprep.subr.bf16.mxu0 0
        %1015 = vmatpush1.bf16.msra.mxu0 0
        %1016 = vmatprep.subr.bf16.mxu0 0
        %1017 = vmatpush1.bf16.msra.mxu0 0
        %1018 = vmatprep.subr.bf16.mxu0 0
        %1019 = vmatpush1.bf16.msra.mxu0 0
        %1020 = vmatprep.subr.bf16.mxu0 0
        %1021 = vmatpush1.bf16.msra.mxu0 0
        %1022 = vmatprep.subr.bf16.mxu0 0
        %1023 = vmatpush1.bf16.msra.mxu0 0
        %1024 = vmatprep.subr.bf16.mxu0 0
        %1025 = vmatpush1.bf16.msra.mxu0 0
        %1026 = vmatprep.subr.bf16.mxu0 0
        %1027 = vmatpush1.bf16.msra.mxu0 0
        %1028 = vmatprep.subr.bf16.mxu0 0
        %1029 = vmatpush1.bf16.msra.mxu0 0
        %1030 = vmatprep.subr.bf16.mxu0 0
        %1031 = vmatpush1.bf16.msra.mxu0 0
        %1032 = vmatprep.subr.bf16.mxu0 0
        %1033 = vmatpush1.bf16.msra.mxu0 0
        %1034 = vmatprep.mubr.bf16.mxu0 0
        %1035 = vmatmul.mubr.bf16.gmra.mrb[0].mxu0 %v994
        %v1036 = vpop.f32.mrb[0].mxu0
        %v1037 = vadd.f32 0.0, %v1036
        %v1038 = vpop.f32.mrb[0].mxu0
        %v1039 = vadd.f32 0.0, %v1038
        %v1040 = vpop.f32.mrb[0].mxu0
        %v1041 = vpop.f32.mrb[0].mxu0
        %1042 = vdwg.mxu0
        %v1043 = vadd.f32 %v974, %v1037
        %v1044 = vadd.f32 %v975, %v1039
        %1045 = vrot.lane.b32.xlu0 %v486, 111
        %v1046 = vpop.permute.xlu0 %1045
        %1047 = vrot.lane.b32.xlu0 %v487, 111
        %v1048 = vpop.permute.xlu0 %1047
        %vm1049 = vcmp.lt.s32.totalorder %v489, 111
        %v1050 = vsel %vm1049, %v1046, %v1048
        %v1051 = vsel %vm1049, %v1048, %v1046
        %vm1052 = vmand %vm497, %vm501
        %vm1053 = vmand %vm498, %vm502
        %v1054 = vsel %vm1052, 1, 0
        %v1055 = vsel %vm1053, 1, 0
        %vm1056 = vcmp.eq.s32.totalorder %v1054, 1
        %vm1057 = vcmp.eq.s32.totalorder %v1055, 1
        %v1058 = vsel %vm1056, %v1050, 0.0
        %v1059 = vsel %vm1057, %v1051, 0.0
        %s1060 = scalar_lea.vmem %s2, 16
        %v1061 = vld [vmem:[%s1060] sm:$0x3]
        %v1062 = vpack.c.bf16 %v1058, %v1058
        %v1063 = vpack.c.bf16 %v1059, %v1059
        %v1065 = vsel %vm538, %v1061, 0
        %v1068 = vsel %vm542, %v1062, 0
        %v1071 = vsel %vm542, %v1063, 0
        %1073 = vmatprep.subr.bf16.mxu0 %v1071
        %1074 = vmatpush1.bf16.msra.mxu0 %v1068
        %1075 = vmatprep.subr.bf16.mxu0 0
        %1076 = vmatpush1.bf16.msra.mxu0 0
        %1077 = vmatprep.subr.bf16.mxu0 0
        %1078 = vmatpush1.bf16.msra.mxu0 0
        %1079 = vmatprep.subr.bf16.mxu0 0
        %1080 = vmatpush1.bf16.msra.mxu0 0
        %1081 = vmatprep.subr.bf16.mxu0 0
        %1082 = vmatpush1.bf16.msra.mxu0 0
        %1083 = vmatprep.subr.bf16.mxu0 0
        %1084 = vmatpush1.bf16.msra.mxu0 0
        %1085 = vmatprep.subr.bf16.mxu0 0
        %1086 = vmatpush1.bf16.msra.mxu0 0
        %1087 = vmatprep.subr.bf16.mxu0 0
        %1088 = vmatpush1.bf16.msra.mxu0 0
        %1089 = vmatprep.subr.bf16.mxu0 0
        %1090 = vmatpush1.bf16.msra.mxu0 0
        %1091 = vmatprep.subr.bf16.mxu0 0
        %1092 = vmatpush1.bf16.msra.mxu0 0
        %1093 = vmatprep.subr.bf16.mxu0 0
        %1094 = vmatpush1.bf16.msra.mxu0 0
        %1095 = vmatprep.subr.bf16.mxu0 0
        %1096 = vmatpush1.bf16.msra.mxu0 0
        %1097 = vmatprep.subr.bf16.mxu0 0
        %1098 = vmatpush1.bf16.msra.mxu0 0
        %1099 = vmatprep.subr.bf16.mxu0 0
        %1100 = vmatpush1.bf16.msra.mxu0 0
        %1101 = vmatprep.subr.bf16.mxu0 0
        %1102 = vmatpush1.bf16.msra.mxu0 0
        %1103 = vmatprep.subr.bf16.mxu0 0
        %1104 = vmatpush1.bf16.msra.mxu0 0
        %1105 = vmatprep.mubr.bf16.mxu0 0
        %1106 = vmatmul.mubr.bf16.gmra.mrb[0].mxu0 %v1065
        %v1107 = vpop.f32.mrb[0].mxu0
        %v1108 = vadd.f32 0.0, %v1107
        %v1109 = vpop.f32.mrb[0].mxu0
        %v1110 = vadd.f32 0.0, %v1109
        %v1111 = vpop.f32.mrb[0].mxu0
        %v1112 = vpop.f32.mrb[0].mxu0
        %1113 = vdwg.mxu0
        %v1114 = vadd.f32 %v1043, %v1108
        %v1115 = vadd.f32 %v1044, %v1110
        %v1116 = vld [vmem:[%s6] sm:$0xf]
        %1118 = vset.pattern.permute.xlu0 0
        %1119 = vperm.xlu0 %1118, %v1116
        %v1120 = vpop.permute.xlu0 %1119
        %v1122 = vadd.f32 %v1114, %v1120
        %v1123 = vadd.f32 %v1115, %v1120
        %vm1124 = vcmp.gt.f32.partialorder %v1122, 0.0
        %vm1125 = vcmp.gt.f32.partialorder %v1123, 0.0
        %v1126 = vld [vmem:[%s7] sm:$0xf]
        %1128 = vset.pattern.permute.xlu0 0
        %1129 = vperm.xlu0 %1128, %v1126
        %v1130 = vpop.permute.xlu0 %1129
        %v1132 = vmul.f32 %v1130, %v1122
        %v1133 = vmul.f32 %v1130, %v1123
        %v1134 = vsel %vm1124, %v1122, %v1132
        %v1135 = vsel %vm1125, %v1123, %v1133
        %v1136 = vpack.c.bf16 %v1134, %v1134
        %v1137 = vpack.c.bf16 %v1135, %v1135
        %v1138 = vld [vmem:[%s11] sm:$0xf]
        %v1139 = vld [vmem:[%s11 + $0x4] sm:$0xf]
        %v1140 = vld [vmem:[%s11 + $0x8] sm:$0xf]
        %v1141 = vld [vmem:[%s11 + $0xc] sm:$0xf]
        %v1142 = vld [vmem:[%s11 + $0x10] sm:$0xf]
        %v1143 = vld [vmem:[%s11 + $0x14] sm:$0xf]
        %v1144 = vld [vmem:[%s11 + $0x18] sm:$0xf]
        %v1145 = vld [vmem:[%s11 + $0x1c] sm:$0xf]
        %v1146 = vld [vmem:[%s11 + $0x20] sm:$0xf]
        %v1147 = vld [vmem:[%s11 + $0x24] sm:$0xf]
        %v1148 = vld [vmem:[%s11 + $0x28] sm:$0xf]
        %v1149 = vld [vmem:[%s11 + $0x2c] sm:$0xf]
        %v1150 = vld [vmem:[%s11 + $0x30] sm:$0xf]
        %v1151 = vld [vmem:[%s11 + $0x34] sm:$0xf]
        %v1152 = vld [vmem:[%s11 + $0x38] sm:$0xf]
        %v1153 = vld [vmem:[%s11 + $0x3c] sm:$0xf]
        %v1154 = vld [vmem:[%s11 + $0x40] sm:$0xf]
        %v1155 = vld [vmem:[%s11 + $0x44] sm:$0xf]
        %v1156 = vld [vmem:[%s11 + $0x48] sm:$0xf]
        %v1157 = vld [vmem:[%s11 + $0x4c] sm:$0xf]
        %v1158 = vld [vmem:[%s11 + $0x50] sm:$0xf]
        %v1159 = vld [vmem:[%s11 + $0x54] sm:$0xf]
        %v1160 = vld [vmem:[%s11 + $0x58] sm:$0xf]
        %v1161 = vld [vmem:[%s11 + $0x5c] sm:$0xf]
        %v1162 = vld [vmem:[%s11 + $0x60] sm:$0xf]
        %v1163 = vld [vmem:[%s11 + $0x64] sm:$0xf]
        %v1164 = vld [vmem:[%s11 + $0x68] sm:$0xf]
        %v1165 = vld [vmem:[%s11 + $0x6c] sm:$0xf]
        %v1166 = vld [vmem:[%s11 + $0x70] sm:$0xf]
        %v1167 = vld [vmem:[%s11 + $0x74] sm:$0xf]
        %v1168 = vld [vmem:[%s11 + $0x78] sm:$0xf]
        %v1169 = vld [vmem:[%s11 + $0x7c] sm:$0xf]
        %v1202 = vunpack.c.l.b16 %v1138
        %v1203 = vunpack.c.l.b16 %v1139
        %v1204 = vunpack.c.l.b16 %v1140
        %v1205 = vunpack.c.l.b16 %v1141
        %v1206 = vunpack.c.l.b16 %v1142
        %v1207 = vunpack.c.l.b16 %v1143
        %v1208 = vunpack.c.l.b16 %v1144
        %v1209 = vunpack.c.l.b16 %v1145
        %v1210 = vunpack.c.l.b16 %v1146
        %v1211 = vunpack.c.l.b16 %v1147
        %v1212 = vunpack.c.l.b16 %v1148
        %v1213 = vunpack.c.l.b16 %v1149
        %v1214 = vunpack.c.l.b16 %v1150
        %v1215 = vunpack.c.l.b16 %v1151
        %v1216 = vunpack.c.l.b16 %v1152
        %v1217 = vunpack.c.l.b16 %v1153
        %v1218 = vunpack.c.l.b16 %v1154
        %v1219 = vunpack.c.l.b16 %v1155
        %v1220 = vunpack.c.l.b16 %v1156
        %v1221 = vunpack.c.l.b16 %v1157
        %v1222 = vunpack.c.l.b16 %v1158
        %v1223 = vunpack.c.l.b16 %v1159
        %v1224 = vunpack.c.l.b16 %v1160
        %v1225 = vunpack.c.l.b16 %v1161
        %v1226 = vunpack.c.l.b16 %v1162
        %v1227 = vunpack.c.l.b16 %v1163
        %v1228 = vunpack.c.l.b16 %v1164
        %v1229 = vunpack.c.l.b16 %v1165
        %v1230 = vunpack.c.l.b16 %v1166
        %v1231 = vunpack.c.l.b16 %v1167
        %v1232 = vunpack.c.l.b16 %v1168
        %v1233 = vunpack.c.l.b16 %v1169
        %v1234 = vpack.c.b16 %v1203, %v1202
        %v1235 = vpack.c.b16 %v1205, %v1204
        %v1236 = vpack.c.b16 %v1207, %v1206
        %v1237 = vpack.c.b16 %v1209, %v1208
        %v1238 = vpack.c.b16 %v1211, %v1210
        %v1239 = vpack.c.b16 %v1213, %v1212
        %v1240 = vpack.c.b16 %v1215, %v1214
        %v1241 = vpack.c.b16 %v1217, %v1216
        %v1242 = vpack.c.b16 %v1219, %v1218
        %v1243 = vpack.c.b16 %v1221, %v1220
        %v1244 = vpack.c.b16 %v1223, %v1222
        %v1245 = vpack.c.b16 %v1225, %v1224
        %v1246 = vpack.c.b16 %v1227, %v1226
        %v1247 = vpack.c.b16 %v1229, %v1228
        %v1248 = vpack.c.b16 %v1231, %v1230
        %v1249 = vpack.c.b16 %v1233, %v1232
        %1266 = vmatprep.subr.bf16.mxu0 0
        %1267 = vmatpush1.bf16.msra.mxu0 %v1234
        %1268 = vmatprep.subr.bf16.mxu0 0
        %1269 = vmatpush1.bf16.msra.mxu0 %v1235
        %1270 = vmatprep.subr.bf16.mxu0 0
        %1271 = vmatpush1.bf16.msra.mxu0 %v1236
        %1272 = vmatprep.subr.bf16.mxu0 0
        %1273 = vmatpush1.bf16.msra.mxu0 %v1237
        %1274 = vmatprep.subr.bf16.mxu0 0
        %1275 = vmatpush1.bf16.msra.mxu0 %v1238
        %1276 = vmatprep.subr.bf16.mxu0 0
        %1277 = vmatpush1.bf16.msra.mxu0 %v1239
        %1278 = vmatprep.subr.bf16.mxu0 0
        %1279 = vmatpush1.bf16.msra.mxu0 %v1240
        %1280 = vmatprep.subr.bf16.mxu0 0
        %1281 = vmatpush1.bf16.msra.mxu0 %v1241
        %1282 = vmatprep.subr.bf16.mxu0 0
        %1283 = vmatpush1.bf16.msra.mxu0 %v1242
        %1284 = vmatprep.subr.bf16.mxu0 0
        %1285 = vmatpush1.bf16.msra.mxu0 %v1243
        %1286 = vmatprep.subr.bf16.mxu0 0
        %1287 = vmatpush1.bf16.msra.mxu0 %v1244
        %1288 = vmatprep.subr.bf16.mxu0 0
        %1289 = vmatpush1.bf16.msra.mxu0 %v1245
        %1290 = vmatprep.subr.bf16.mxu0 0
        %1291 = vmatpush1.bf16.msra.mxu0 %v1246
        %1292 = vmatprep.subr.bf16.mxu0 0
        %1293 = vmatpush1.bf16.msra.mxu0 %v1247
        %1294 = vmatprep.subr.bf16.mxu0 0
        %1295 = vmatpush1.bf16.msra.mxu0 %v1248
        %1296 = vmatprep.subr.bf16.mxu0 0
        %1297 = vmatpush1.bf16.msra.mxu0 %v1249
        %1298 = vmatprep.mubr.bf16.mxu0 %v1137
        %1299 = vmatmul.mubr.bf16.gmra.mrb[0].mxu0 %v1136
        %v1300 = vpop.f32.mrb[0].mxu0
        %v1301 = vadd.f32 0.0, %v1300
        %v1302 = vpop.f32.mrb[0].mxu0
        %v1303 = vpop.f32.mrb[0].mxu0
        %v1304 = vpop.f32.mrb[0].mxu0
        %1305 = vdwg.mxu0
        %v1306 = vpack.c.bf16 %v1301, %v1301
        %v1307 = vld [vmem:[%s3] sm:$0xf]
        %v1308 = vld [vmem:[%s3 + $0x4] sm:$0xf]
        %v1309 = vld [vmem:[%s8] sm:$0xff]
        %v1310 = vld [vmem:[%s8 + $0x8] sm:$0xff]
        %1312 = vset.pattern.permute.xlu0 0
        %1313 = vperm.xlu0 %1312, %v1309
        %v1314 = vpop.permute.xlu0 %1313
        %1317 = vset.pattern.permute.xlu0 0
        %1318 = vperm.xlu0 %1317, %v1310
        %v1319 = vpop.permute.xlu0 %1318
        %v1323 = vunpack.c.l.b16 %v1307
        %v1324 = vunpack.c.l.b16 %v1308
        %v1325 = vpack.c.b16 %v1324, %v1323
        %v1327 = vsel %vm538, %v1325, 0
        %v1330 = vsel %vm542, %v1306, 0
        %1332 = vmatprep.subr.bf16.mxu0 0
        %1333 = vmatpush1.bf16.msra.mxu0 %v1330
        %1334 = vmatprep.subr.bf16.mxu0 0
        %1335 = vmatpush1.bf16.msra.mxu0 0
        %1336 = vmatprep.subr.bf16.mxu0 0
        %1337 = vmatpush1.bf16.msra.mxu0 0
        %1338 = vmatprep.subr.bf16.mxu0 0
        %1339 = vmatpush1.bf16.msra.mxu0 0
        %1340 = vmatprep.subr.bf16.mxu0 0
        %1341 = vmatpush1.bf16.msra.mxu0 0
        %1342 = vmatprep.subr.bf16.mxu0 0
        %1343 = vmatpush1.bf16.msra.mxu0 0
        %1344 = vmatprep.subr.bf16.mxu0 0
        %1345 = vmatpush1.bf16.msra.mxu0 0
        %1346 = vmatprep.subr.bf16.mxu0 0
        %1347 = vmatpush1.bf16.msra.mxu0 0
        %1348 = vmatprep.subr.bf16.mxu0 0
        %1349 = vmatpush1.bf16.msra.mxu0 0
        %1350 = vmatprep.subr.bf16.mxu0 0
        %1351 = vmatpush1.bf16.msra.mxu0 0
        %1352 = vmatprep.subr.bf16.mxu0 0
        %1353 = vmatpush1.bf16.msra.mxu0 0
        %1354 = vmatprep.subr.bf16.mxu0 0
        %1355 = vmatpush1.bf16.msra.mxu0 0
        %1356 = vmatprep.subr.bf16.mxu0 0
        %1357 = vmatpush1.bf16.msra.mxu0 0
        %1358 = vmatprep.subr.bf16.mxu0 0
        %1359 = vmatpush1.bf16.msra.mxu0 0
        %1360 = vmatprep.subr.bf16.mxu0 0
        %1361 = vmatpush1.bf16.msra.mxu0 0
        %1362 = vmatprep.subr.bf16.mxu0 0
        %1363 = vmatpush1.bf16.msra.mxu0 0
        %1364 = vmatprep.mubr.bf16.mxu0 0
        %1365 = vmatmul.mubr.bf16.gmra.mrb[0].mxu0 %v1327
        %v1366 = vpop.f32.mrb[0].mxu0
        %v1367 = vadd.f32 %v1314, %v1366
        %v1368 = vpop.f32.mrb[0].mxu0
        %v1369 = vpop.f32.mrb[0].mxu0
        %v1370 = vadd.f32 %v1319, %v1369
        %v1371 = vpop.f32.mrb[0].mxu0
        %1372 = vdwg.mxu0
        %1373 = vmatprep.subr.bf16.mxu0 0
        %1374 = vmatpush1.bf16.msra.mxu0 %v1234
        %1375 = vmatprep.subr.bf16.mxu0 0
        %1376 = vmatpush1.bf16.msra.mxu0 %v1235
        %1377 = vmatprep.subr.bf16.mxu0 0
        %1378 = vmatpush1.bf16.msra.mxu0 %v1236
        %1379 = vmatprep.subr.bf16.mxu0 0
        %1380 = vmatpush1.bf16.msra.mxu0 %v1237
        %1381 = vmatprep.subr.bf16.mxu0 0
        %1382 = vmatpush1.bf16.msra.mxu0 %v1238
        %1383 = vmatprep.subr.bf16.mxu0 0
        %1384 = vmatpush1.bf16.msra.mxu0 %v1239
        %1385 = vmatprep.subr.bf16.mxu0 0
        %1386 = vmatpush1.bf16.msra.mxu0 %v1240
        %1387 = vmatprep.subr.bf16.mxu0 0
        %1388 = vmatpush1.bf16.msra.mxu0 %v1241
        %1389 = vmatprep.subr.bf16.mxu0 0
        %1390 = vmatpush1.bf16.msra.mxu0 %v1242
        %1391 = vmatprep.subr.bf16.mxu0 0
        %1392 = vmatpush1.bf16.msra.mxu0 %v1243
        %1393 = vmatprep.subr.bf16.mxu0 0
        %1394 = vmatpush1.bf16.msra.mxu0 %v1244
        %1395 = vmatprep.subr.bf16.mxu0 0
        %1396 = vmatpush1.bf16.msra.mxu0 %v1245
        %1397 = vmatprep.subr.bf16.mxu0 0
        %1398 = vmatpush1.bf16.msra.mxu0 %v1246
        %1399 = vmatprep.subr.bf16.mxu0 0
        %1400 = vmatpush1.bf16.msra.mxu0 %v1247
        %1401 = vmatprep.subr.bf16.mxu0 0
        %1402 = vmatpush1.bf16.msra.mxu0 %v1248
        %1403 = vmatprep.subr.bf16.mxu0 0
        %1404 = vmatpush1.bf16.msra.mxu0 %v1249
        %1405 = vmatprep.mubr.bf16.mxu0 %v416
        %1406 = vmatmul.mubr.bf16.gmra.mrb[0].mxu0 %v415
        %v1407 = vpop.f32.mrb[0].mxu0
        %v1408 = vadd.f32 0.0, %v1407
        %v1409 = vpop.f32.mrb[0].mxu0
        %v1410 = vpop.f32.mrb[0].mxu0
        %v1411 = vpop.f32.mrb[0].mxu0
        %1412 = vdwg.mxu0
        %v1413 = vpack.c.bf16 %v1408, %v1408
        %v1414 = vld [vmem:[%s9] sm:$0xf]
        %v1415 = vld [vmem:[%s9 + $0x4] sm:$0xf]
        %v1416 = vld [vmem:[%s10] sm:$0xff]
        %v1417 = vld [vmem:[%s10 + $0x8] sm:$0xff]
        %1419 = vset.pattern.permute.xlu0 0
        %1420 = vperm.xlu0 %1419, %v1416
        %v1421 = vpop.permute.xlu0 %1420
        %1424 = vset.pattern.permute.xlu0 0
        %1425 = vperm.xlu0 %1424, %v1417
        %v1426 = vpop.permute.xlu0 %1425
        %v1430 = vunpack.c.l.b16 %v1414
        %v1431 = vunpack.c.l.b16 %v1415
        %v1432 = vpack.c.b16 %v1431, %v1430
        %v1434 = vsel %vm424, %v1432, 0
        %v1437 = vsel %vm428, %v1413, 0
        %1439 = vmatprep.subr.bf16.mxu0 0
        %1440 = vmatpush1.bf16.msra.mxu0 %v1437
        %1441 = vmatprep.subr.bf16.mxu0 0
        %1442 = vmatpush1.bf16.msra.mxu0 0
        %1443 = vmatprep.subr.bf16.mxu0 0
        %1444 = vmatpush1.bf16.msra.mxu0 0
        %1445 = vmatprep.subr.bf16.mxu0 0
        %1446 = vmatpush1.bf16.msra.mxu0 0
        %1447 = vmatprep.subr.bf16.mxu0 0
        %1448 = vmatpush1.bf16.msra.mxu0 0
        %1449 = vmatprep.subr.bf16.mxu0 0
        %1450 = vmatpush1.bf16.msra.mxu0 0
        %1451 = vmatprep.subr.bf16.mxu0 0
        %1452 = vmatpush1.bf16.msra.mxu0 0
        %1453 = vmatprep.subr.bf16.mxu0 0
        %1454 = vmatpush1.bf16.msra.mxu0 0
        %1455 = vmatprep.subr.bf16.mxu0 0
        %1456 = vmatpush1.bf16.msra.mxu0 0
        %1457 = vmatprep.subr.bf16.mxu0 0
        %1458 = vmatpush1.bf16.msra.mxu0 0
        %1459 = vmatprep.subr.bf16.mxu0 0
        %1460 = vmatpush1.bf16.msra.mxu0 0
        %1461 = vmatprep.subr.bf16.mxu0 0
        %1462 = vmatpush1.bf16.msra.mxu0 0
        %1463 = vmatprep.subr.bf16.mxu0 0
        %1464 = vmatpush1.bf16.msra.mxu0 0
        %1465 = vmatprep.subr.bf16.mxu0 0
        %1466 = vmatpush1.bf16.msra.mxu0 0
        %1467 = vmatprep.subr.bf16.mxu0 0
        %1468 = vmatpush1.bf16.msra.mxu0 0
        %1469 = vmatprep.subr.bf16.mxu0 0
        %1470 = vmatpush1.bf16.msra.mxu0 0
        %1471 = vmatprep.mubr.bf16.mxu0 0
        %1472 = vmatmul.mubr.bf16.gmra.mrb[0].mxu0 %v1434
        %v1473 = vpop.f32.mrb[0].mxu0
        %v1474 = vadd.f32 %v1421, %v1473
        %v1475 = vpop.f32.mrb[0].mxu0
        %v1476 = vpop.f32.mrb[0].mxu0
        %v1477 = vadd.f32 %v1426, %v1476
        %v1478 = vpop.f32.mrb[0].mxu0
        %1479 = vdwg.mxu0
        %v1480 = vadd.f32 %v1367, %v1474
        %v1481 = vadd.f32 %v1370, %v1477
        %vm1482 = vcmask 523264
        %1483 = vst.msk [vmem:[%s406] sm:$0xff] %vm1482, %v1480
        %1484 = vst.msk [vmem:[%s406 + $0x8] sm:$0xff] %vm1482, %v1481
        %s1485 = sand.u32 %s291, 1
        %s1486 = scalar_lea.sflag [#allocation3], %s1485
        %s1487 = sand.u32 %s291, 1
        %s1488 = smul.addr %s1487, 16
        %s1489 = scalar_lea.vmem [#allocation2], %s1488
        // Predicated region
        $region69: #{tpu_custom_call.1} parent=67 // pred_check
          %p1490 = pneg %p301
        $region70: #{tpu_custom_call.1} parent=67 // pred_check_branch
          %1492 = sbr.rel (%p1490) target = $region72
        $region71: #{tpu_custom_call.1} parent=67 // pred_region
          %s1494 = ssub.s32 256, 256
          %1495 = vsyncadd %s1486, %s1494
          %s1496 = smul.addr %s26, 2
          %s1497 = smul.addr %s1496, 128
          %s1498 = scalar_lea.hbm %s12, %s1497
          %s1499 = sshll.u32 %s1489, 4
          %s1500 = int_to_ptr.vmem [resolvable:$true] %s1499
          %1505 = dma.vmem_to_hbm [thread:$0]  %s1500, 256, %s1498, %s1486, 128, 128, 8
        $region72: #{tpu_custom_call.1} parent=67 // pred_fallthru
          _
      $region68: #{tpu_custom_call.1} parent=5 // pred_fallthru
        _
      %p1506 = scmp.le.s32.totalorder 2, %s21
      // Predicated region
      $region73: #{tpu_custom_call.1} parent=5 // pred_check
        %p1507 = pneg %p1506
      $region74: #{tpu_custom_call.1} parent=5 // pred_check_branch
        %1509 = sbr.rel (%p1507) target = $region76
      $region75: #{tpu_custom_call.1} parent=5 // pred_region
        %s1510 = ssub.s32 %s21, 2
        // Predicated region
        $region77: #{tpu_custom_call.1} parent=75 // pred_check
          %p1511 = pneg %p307
        $region78: #{tpu_custom_call.1} parent=75 // pred_check_branch
          %1513 = sbr.rel (%p1511) target = $region80
        $region79: #{tpu_custom_call.1} parent=75 // pred_region
          %s1514 = sand.u32 %s292, 1
          %s1515 = scalar_lea.sflag [#allocation3], %s1514
          %s1516 = sand.u32 %s292, 1
          %s1517 = smul.addr %s1516, 16
          %s1518 = scalar_lea.vmem [#allocation2], %s1517
          %1519 = dma.done %s1515, 256
        $region80: #{tpu_custom_call.1} parent=75 // pred_fallthru
          _
      $region76: #{tpu_custom_call.1} parent=5 // pred_fallthru
        _
    $region6: #{tpu_custom_call.1} parent=1 // loop_footer
      %s25 = sadd.s32 1, %s21
    $region7: #{tpu_custom_call.1} parent=1 // loop_footer_branch
      %20 = sbr.rel target = $region3
    $region8: #{tpu_custom_call.1} parent=1 // loop_exit
      _
    %1520 = vsyncpa [#allocation3], 1
    %s1521 = scalar_lea.sflag [#allocation3], 1
    %1522 = vsyncpa %s1521, 1

</llo_original>
